<compile_context>
chip_gen: v7x
topology: tpu7x:2x2x1
jax: 0.10.0
libtpu: 0.0.40
codegen_flags: <defaults>
</compile_context>

<pallas_src>
import functools

import jax
import jax.numpy as jnp
from jax import lax
from jax.experimental import pallas as pl
from jax.experimental.pallas import tpu as pltpu

_LANE = 128     # gate blocks & output padded to lane width
_SUBLANE = 8    # batch padded to sublane width


def _round_up(n, m):
    return ((n + m - 1) // m) * m


# ----------------------------- Pallas kernel --------------------------------
def _qrnn_lstm_kernel(xf_ref,      # (T*Bp, I)    VMEM  time-major, batch-padded, flattened
                      wih_ref,     # (I, 4*Hp)    VMEM  gate k at cols [k*Hp, k*Hp+H)
                      whh_ref,     # (Hp, 4*Hp)   VMEM  same gate-block layout
                      b_ref,       # (1, 4*Hp)    VMEM  b_ih + b_hh, gate-block layout
                      wout_ref,    # (Hp, Op)     VMEM
                      bout_ref,    # (1, Op)      VMEM
                      out_ref,     # (Bp, Op)     VMEM  lane-dense output
                      gin_ref,     # (T*Bp, 4*Hp) VMEM scratch: hoisted input projection
                      *, hp, bp, seq_len):
    T = seq_len

    # ---- hoisted input projection: one matmul for every timestep at once,
    #      bias folded in; removed from the serial critical path. -----------
    gin_ref[...] = (jnp.dot(xf_ref[...], wih_ref[...],
                            preferred_element_type=jnp.float32)
                    + b_ref[...])

    # ---- serial recurrence; h/c carried as vreg values, not VMEM refs -----
    h0 = jnp.zeros((bp, hp), jnp.float32)
    c0 = jnp.zeros((bp, hp), jnp.float32)

    def step(t, carry):
        h, c = carry
        gates = (gin_ref[pl.ds(t * bp, bp), :]
                 + jnp.dot(h, whh_ref[...], preferred_element_type=jnp.float32))
        # PyTorch LSTM gate ordering: input, forget, cell(g), output.
        # Each gate block starts at a multiple of 128 lanes -> plain vreg view.
        i_g = jax.nn.sigmoid(gates[:, 0 * hp:1 * hp])
        f_g = jax.nn.sigmoid(gates[:, 1 * hp:2 * hp])
        g_g = jnp.tanh(gates[:, 2 * hp:3 * hp])
        o_g = jax.nn.sigmoid(gates[:, 3 * hp:4 * hp])
        c_new = f_g * c + i_g * g_g
        h_new = o_g * jnp.tanh(c_new)
        return (h_new, c_new)

    # T is small & static: fully unroll so the LLO scheduler overlaps EUP
    # (sigmoid/tanh) of step t with the MXU push of step t+1.
    h_fin, _ = lax.fori_loop(0, T, step, (h0, c0), unroll=True)

    # out = Linear(h_n); lane-dense (Bp, Op) store, real slice taken in wrapper.
    out_ref[...] = (jnp.dot(h_fin, wout_ref[...],
                            preferred_element_type=jnp.float32)
                    + bout_ref[...])


# ----------------------------- wrapper ---------------------------------------
def qrnn_forward(x, params, *, hidden):
    """x: (B, T, I) float32, batch_first (PyTorch convention).
    Returns (1, B, 2*output_size) matching `self.out(h_n)`."""
    B, T, I = x.shape
    H = hidden
    Hp = _round_up(H, _LANE)
    Bp = _round_up(B, _SUBLANE)

    w_ih, w_hh = params["w_ih"], params["w_hh"]
    b_ih, b_hh = params["b_ih"], params["b_hh"]
    w_out, b_out = params["w_out"], params["b_out"]
    out_features = w_out.shape[0]            # = 2 * output_size
    Op = _round_up(out_features, _LANE)

    f32 = jnp.float32

    # ---- layout glue (one-time, outside the hot path) ----------------------
    # time-major, batch padded to Bp, flattened to (T*Bp, I)
    x_tm = jnp.transpose(x, (1, 0, 2)).astype(f32)                  # (T, B, I)
    x_flat = jnp.zeros((T, Bp, I), f32).at[:, :B, :].set(x_tm).reshape(T * Bp, I)

    def gate_blocks(w, rows_pad):
        # w: (4H, F) PyTorch layout -> (rows_pad, 4*Hp); gate k's weights go
        # (transposed) into columns [k*Hp, k*Hp + H); everything else zero so
        # padded h/c lanes can never contaminate valid outputs.
        F = w.shape[1]
        out = jnp.zeros((rows_pad, 4 * Hp), f32)
        for k in range(4):
            out = out.at[:F, k * Hp:k * Hp + H].set(
                jnp.transpose(w[k * H:(k + 1) * H, :]).astype(f32))
        return out

    wih_p = gate_blocks(w_ih, I)             # (I,  4Hp)
    whh_p = gate_blocks(w_hh, Hp)            # (Hp, 4Hp)

    b_sum = (b_ih + b_hh).astype(f32)
    b_p = jnp.zeros((1, 4 * Hp), f32)
    for k in range(4):
        b_p = b_p.at[0, k * Hp:k * Hp + H].set(b_sum[k * H:(k + 1) * H])

    wout_p = jnp.zeros((Hp, Op), f32).at[:H, :out_features].set(
        jnp.transpose(w_out).astype(f32))
    bout_p = jnp.zeros((1, Op), f32).at[0, :out_features].set(b_out.astype(f32))

    vmem = pl.BlockSpec(memory_space=pltpu.MemorySpace.VMEM)

    # TODO(synk): for long sequences stream x via a time-chunk grid axis
    # ("arbitrary") with h/c persisting in scratch, and cast weights to bf16
    # (f32 accumulation) for large H; unnecessary at these shapes.
    out_p = pl.pallas_call(
        functools.partial(_qrnn_lstm_kernel, hp=Hp, bp=Bp, seq_len=T),
        out_shape=jax.ShapeDtypeStruct((Bp, Op), f32),
        in_specs=[vmem] * 6,
        out_specs=vmem,
        scratch_shapes=[pltpu.VMEM((T * Bp, 4 * Hp), f32)],
    )(x_flat, wih_p, whh_p, b_p, wout_p, bout_p)

    # h_n has a leading num_layers=1 axis in PyTorch -> out is (1, B, 2*O)
    return out_p[:B, :out_features][None, :, :]


# ----------------------------- reference (pure JAX) ---------------------------
def qrnn_forward_ref(x, params, *, hidden):
    H = hidden
    w_ih, w_hh, b_ih, b_hh, w_out, b_out = (
        params["w_ih"], params["w_hh"], params["b_ih"],
        params["b_hh"], params["w_out"], params["b_out"])
    B, T, _ = x.shape
    h = jnp.zeros((B, H), jnp.float32)
    c = jnp.zeros((B, H), jnp.float32)
    for t in range(T):
        g = x[:, t, :] @ w_ih.T + b_ih + h @ w_hh.T + b_hh
        i = jax.nn.sigmoid(g[:, 0 * H:1 * H])
        f = jax.nn.sigmoid(g[:, 1 * H:2 * H])
        gg = jnp.tanh(g[:, 2 * H:3 * H])
        o = jax.nn.sigmoid(g[:, 3 * H:4 * H])
        c = f * c + i * gg
        h = o * jnp.tanh(c)
    return (h @ w_out.T + b_out)[None, :, :]


# ----------------------------- main -------------------------------------------
if __name__ == "__main__":
    # Module defaults: input_size=1, embedding_size (hidden)=20, output_size=1,
    # n_layers=1, rnn_mode='LSTM'. Small shapes: batch=2, seq=8.
    B, T, I, H, O = 2, 8, 1, 20, 1

    key = jax.random.PRNGKey(0)
    ks = jax.random.split(key, 7)
    scale = 1.0 / jnp.sqrt(H)  # PyTorch default uniform(-1/sqrt(H), 1/sqrt(H))

    params = {
        "w_ih":  jax.random.uniform(ks[0], (4 * H, I), jnp.float32, -scale, scale),
        "w_hh":  jax.random.uniform(ks[1], (4 * H, H), jnp.float32, -scale, scale),
        "b_ih":  jax.random.uniform(ks[2], (4 * H,),   jnp.float32, -scale, scale),
        "b_hh":  jax.random.uniform(ks[3], (4 * H,),   jnp.float32, -scale, scale),
        "w_out": jax.random.uniform(ks[4], (2 * O, H), jnp.float32, -scale, scale),
        "b_out": jax.random.uniform(ks[5], (2 * O,),   jnp.float32, -scale, scale),
    }

    x = jax.random.normal(ks[6], (B, T, I), jnp.float32)

    out = qrnn_forward(x, params, hidden=H)
    out = jax.block_until_ready(out)

    ref = qrnn_forward_ref(x, params, hidden=H)
    assert out.shape == (1, B, 2 * O), out.shape
    assert jnp.allclose(out, ref, atol=1e-5, rtol=1e-5), (out, ref)

    print("KERNEL_OK")
</pallas_src>

<mosaic_0001>
module attributes {stable_mosaic.version = 11 : i64} {
  func.func @_qrnn_lstm_kernel(%arg0: memref<64x1xf32, #tpu.memory_space<vmem>>, %arg1: memref<1x512xf32, #tpu.memory_space<vmem>>, %arg2: memref<128x512xf32, #tpu.memory_space<vmem>>, %arg3: memref<1x512xf32, #tpu.memory_space<vmem>>, %arg4: memref<128x128xf32, #tpu.memory_space<vmem>>, %arg5: memref<1x128xf32, #tpu.memory_space<vmem>>, %arg6: memref<8x128xf32, #tpu.memory_space<vmem>>, %arg7: memref<64x512xf32, #tpu.memory_space<vmem>>) attributes {dimension_semantics = [], scalar_prefetch = 0 : i64, scratch_operands = 1 : i64, tpu.core_type = #tpu.core_type<tc>} {
    %c0 = arith.constant 0 : index
    %c0_0 = arith.constant 0 : index
    %0 = vector.load %arg0[%c0, %c0_0] : memref<64x1xf32, #tpu.memory_space<vmem>>, vector<64x1xf32>
    %c0_1 = arith.constant 0 : index
    %c0_2 = arith.constant 0 : index
    %1 = vector.load %arg1[%c0_1, %c0_2] : memref<1x512xf32, #tpu.memory_space<vmem>>, vector<1x512xf32>
    %cst = arith.constant dense<0.000000e+00> : vector<64x512xf32>
    %2 = tpu.matmul %0, %1, %cst {dimension_numbers = #tpu.dot_dimension_numbers<[1], [0], [0], [1], [0, 0, 1, 1], [], []>} : vector<64x1xf32>, vector<1x512xf32>, vector<64x512xf32> -> vector<64x512xf32>
    %c0_3 = arith.constant 0 : index
    %c0_4 = arith.constant 0 : index
    %3 = vector.load %arg3[%c0_3, %c0_4] : memref<1x512xf32, #tpu.memory_space<vmem>>, vector<1x512xf32>
    %4 = vector.broadcast %3 : vector<1x512xf32> to vector<64x512xf32>
    %5 = arith.addf %2, %4 : vector<64x512xf32>
    %c0_5 = arith.constant 0 : index
    %c0_6 = arith.constant 0 : index
    %6 = vector.load %arg7[%c0_5, %c0_6] : memref<64x512xf32, #tpu.memory_space<vmem>>, vector<64x512xf32>
    tpu.vector_store %arg7[%c0_5, %c0_6], %5 {strides = array<i32>} : memref<64x512xf32, #tpu.memory_space<vmem>>, vector<64x512xf32>,
    %cst_7 = arith.constant 0.000000e+00 : f32
    %7 = vector.broadcast %cst_7 : f32 to vector<8x128xf32>
    %cst_8 = arith.constant 0.000000e+00 : f32
    %8 = vector.broadcast %cst_8 : f32 to vector<8x128xf32>
    %c0_i32 = arith.constant 0 : i32
    %c8_i32 = arith.constant 8 : i32
    %9 = arith.muli %c0_i32, %c8_i32 : i32
    %10 = arith.index_cast %9 : i32 to index
    %c0_9 = arith.constant 0 : index
    %11 = vector.load %arg7[%10, %c0_9] : memref<64x512xf32, #tpu.memory_space<vmem>>, vector<8x512xf32>
    %c0_10 = arith.constant 0 : index
    %c0_11 = arith.constant 0 : index
    %12 = vector.load %arg2[%c0_10, %c0_11] : memref<128x512xf32, #tpu.memory_space<vmem>>, vector<128x512xf32>
    %cst_12 = arith.constant dense<0.000000e+00> : vector<8x512xf32>
    %13 = tpu.matmul %7, %12, %cst_12 {dimension_numbers = #tpu.dot_dimension_numbers<[1], [0], [0], [1], [0, 0, 1, 1], [], []>} : vector<8x128xf32>, vector<128x512xf32>, vector<8x512xf32> -> vector<8x512xf32>
    %14 = arith.addf %11, %13 : vector<8x512xf32>
    %15 = vector.extract_strided_slice %14 {offsets = [0, 0], sizes = [8, 128], strides = [1, 1]} : vector<8x512xf32> to vector<8x128xf32>
    %16 = arith.negf %15 : vector<8x128xf32>
    %17 = math.exp %16 : vector<8x128xf32>
    %cst_13 = arith.constant 1.000000e+00 : f32
    %18 = vector.broadcast %cst_13 : f32 to vector<8x128xf32>
    %19 = arith.addf %18, %17 : vector<8x128xf32>
    %20 = arith.divf %18, %19 : vector<8x128xf32>
    %21 = vector.extract_strided_slice %14 {offsets = [0, 128], sizes = [8, 128], strides = [1, 1]} : vector<8x512xf32> to vector<8x128xf32>
    %22 = arith.negf %21 : vector<8x128xf32>
    %23 = math.exp %22 : vector<8x128xf32>
    %cst_14 = arith.constant 1.000000e+00 : f32
    %24 = vector.broadcast %cst_14 : f32 to vector<8x128xf32>
    %25 = arith.addf %24, %23 : vector<8x128xf32>
    %26 = arith.divf %24, %25 : vector<8x128xf32>
    %27 = vector.extract_strided_slice %14 {offsets = [0, 256], sizes = [8, 128], strides = [1, 1]} : vector<8x512xf32> to vector<8x128xf32>
    %28 = math.tanh %27 : vector<8x128xf32>
    %29 = vector.extract_strided_slice %14 {offsets = [0, 384], sizes = [8, 128], strides = [1, 1]} : vector<8x512xf32> to vector<8x128xf32>
    %30 = arith.negf %29 : vector<8x128xf32>
    %31 = math.exp %30 : vector<8x128xf32>
    %cst_15 = arith.constant 1.000000e+00 : f32
    %32 = vector.broadcast %cst_15 : f32 to vector<8x128xf32>
    %33 = arith.addf %32, %31 : vector<8x128xf32>
    %34 = arith.divf %32, %33 : vector<8x128xf32>
    %35 = arith.mulf %26, %8 : vector<8x128xf32>
    %36 = arith.mulf %20, %28 : vector<8x128xf32>
    %37 = arith.addf %35, %36 : vector<8x128xf32>
    %38 = math.tanh %37 : vector<8x128xf32>
    %39 = arith.mulf %34, %38 : vector<8x128xf32>
    %c1_i32 = arith.constant 1 : i32
    %c8_i32_16 = arith.constant 8 : i32
    %40 = arith.muli %c1_i32, %c8_i32_16 : i32
    %41 = arith.index_cast %40 : i32 to index
    %c0_17 = arith.constant 0 : index
    %42 = vector.load %arg7[%41, %c0_17] : memref<64x512xf32, #tpu.memory_space<vmem>>, vector<8x512xf32>
    %c0_18 = arith.constant 0 : index
    %c0_19 = arith.constant 0 : index
    %43 = vector.load %arg2[%c0_18, %c0_19] : memref<128x512xf32, #tpu.memory_space<vmem>>, vector<128x512xf32>
    %cst_20 = arith.constant dense<0.000000e+00> : vector<8x512xf32>
    %44 = tpu.matmul %39, %43, %cst_20 {dimension_numbers = #tpu.dot_dimension_numbers<[1], [0], [0], [1], [0, 0, 1, 1], [], []>} : vector<8x128xf32>, vector<128x512xf32>, vector<8x512xf32> -> vector<8x512xf32>
    %45 = arith.addf %42, %44 : vector<8x512xf32>
    %46 = vector.extract_strided_slice %45 {offsets = [0, 0], sizes = [8, 128], strides = [1, 1]} : vector<8x512xf32> to vector<8x128xf32>
    %47 = arith.negf %46 : vector<8x128xf32>
    %48 = math.exp %47 : vector<8x128xf32>
    %cst_21 = arith.constant 1.000000e+00 : f32
    %49 = vector.broadcast %cst_21 : f32 to vector<8x128xf32>
    %50 = arith.addf %49, %48 : vector<8x128xf32>
    %51 = arith.divf %49, %50 : vector<8x128xf32>
    %52 = vector.extract_strided_slice %45 {offsets = [0, 128], sizes = [8, 128], strides = [1, 1]} : vector<8x512xf32> to vector<8x128xf32>
    %53 = arith.negf %52 : vector<8x128xf32>
    %54 = math.exp %53 : vector<8x128xf32>
    %cst_22 = arith.constant 1.000000e+00 : f32
    %55 = vector.broadcast %cst_22 : f32 to vector<8x128xf32>
    %56 = arith.addf %55, %54 : vector<8x128xf32>
    %57 = arith.divf %55, %56 : vector<8x128xf32>
    %58 = vector.extract_strided_slice %45 {offsets = [0, 256], sizes = [8, 128], strides = [1, 1]} : vector<8x512xf32> to vector<8x128xf32>
    %59 = math.tanh %58 : vector<8x128xf32>
    %60 = vector.extract_strided_slice %45 {offsets = [0, 384], sizes = [8, 128], strides = [1, 1]} : vector<8x512xf32> to vector<8x128xf32>
    %61 = arith.negf %60 : vector<8x128xf32>
    %62 = math.exp %61 : vector<8x128xf32>
    %cst_23 = arith.constant 1.000000e+00 : f32
    %63 = vector.broadcast %cst_23 : f32 to vector<8x128xf32>
    %64 = arith.addf %63, %62 : vector<8x128xf32>
    %65 = arith.divf %63, %64 : vector<8x128xf32>
    %66 = arith.mulf %57, %37 : vector<8x128xf32>
    %67 = arith.mulf %51, %59 : vector<8x128xf32>
    %68 = arith.addf %66, %67 : vector<8x128xf32>
    %69 = math.tanh %68 : vector<8x128xf32>
    %70 = arith.mulf %65, %69 : vector<8x128xf32>
    %c2_i32 = arith.constant 2 : i32
    %c8_i32_24 = arith.constant 8 : i32
    %71 = arith.muli %c2_i32, %c8_i32_24 : i32
    %72 = arith.index_cast %71 : i32 to index
    %c0_25 = arith.constant 0 : index
    %73 = vector.load %arg7[%72, %c0_25] : memref<64x512xf32, #tpu.memory_space<vmem>>, vector<8x512xf32>
    %c0_26 = arith.constant 0 : index
    %c0_27 = arith.constant 0 : index
    %74 = vector.load %arg2[%c0_26, %c0_27] : memref<128x512xf32, #tpu.memory_space<vmem>>, vector<128x512xf32>
    %cst_28 = arith.constant dense<0.000000e+00> : vector<8x512xf32>
    %75 = tpu.matmul %70, %74, %cst_28 {dimension_numbers = #tpu.dot_dimension_numbers<[1], [0], [0], [1], [0, 0, 1, 1], [], []>} : vector<8x128xf32>, vector<128x512xf32>, vector<8x512xf32> -> vector<8x512xf32>
    %76 = arith.addf %73, %75 : vector<8x512xf32>
    %77 = vector.extract_strided_slice %76 {offsets = [0, 0], sizes = [8, 128], strides = [1, 1]} : vector<8x512xf32> to vector<8x128xf32>
    %78 = arith.negf %77 : vector<8x128xf32>
    %79 = math.exp %78 : vector<8x128xf32>
    %cst_29 = arith.constant 1.000000e+00 : f32
    %80 = vector.broadcast %cst_29 : f32 to vector<8x128xf32>
    %81 = arith.addf %80, %79 : vector<8x128xf32>
    %82 = arith.divf %80, %81 : vector<8x128xf32>
    %83 = vector.extract_strided_slice %76 {offsets = [0, 128], sizes = [8, 128], strides = [1, 1]} : vector<8x512xf32> to vector<8x128xf32>
    %84 = arith.negf %83 : vector<8x128xf32>
    %85 = math.exp %84 : vector<8x128xf32>
    %cst_30 = arith.constant 1.000000e+00 : f32
    %86 = vector.broadcast %cst_30 : f32 to vector<8x128xf32>
    %87 = arith.addf %86, %85 : vector<8x128xf32>
    %88 = arith.divf %86, %87 : vector<8x128xf32>
    %89 = vector.extract_strided_slice %76 {offsets = [0, 256], sizes = [8, 128], strides = [1, 1]} : vector<8x512xf32> to vector<8x128xf32>
    %90 = math.tanh %89 : vector<8x128xf32>
    %91 = vector.extract_strided_slice %76 {offsets = [0, 384], sizes = [8, 128], strides = [1, 1]} : vector<8x512xf32> to vector<8x128xf32>
    %92 = arith.negf %91 : vector<8x128xf32>
    %93 = math.exp %92 : vector<8x128xf32>
    %cst_31 = arith.constant 1.000000e+00 : f32
    %94 = vector.broadcast %cst_31 : f32 to vector<8x128xf32>
    %95 = arith.addf %94, %93 : vector<8x128xf32>
    %96 = arith.divf %94, %95 : vector<8x128xf32>
    %97 = arith.mulf %88, %68 : vector<8x128xf32>
    %98 = arith.mulf %82, %90 : vector<8x128xf32>
    %99 = arith.addf %97, %98 : vector<8x128xf32>
    %100 = math.tanh %99 : vector<8x128xf32>
    %101 = arith.mulf %96, %100 : vector<8x128xf32>
    %c3_i32 = arith.constant 3 : i32
    %c8_i32_32 = arith.constant 8 : i32
    %102 = arith.muli %c3_i32, %c8_i32_32 : i32
    %103 = arith.index_cast %102 : i32 to index
    %c0_33 = arith.constant 0 : index
    %104 = vector.load %arg7[%103, %c0_33] : memref<64x512xf32, #tpu.memory_space<vmem>>, vector<8x512xf32>
    %c0_34 = arith.constant 0 : index
    %c0_35 = arith.constant 0 : index
    %105 = vector.load %arg2[%c0_34, %c0_35] : memref<128x512xf32, #tpu.memory_space<vmem>>, vector<128x512xf32>
    %cst_36 = arith.constant dense<0.000000e+00> : vector<8x512xf32>
    %106 = tpu.matmul %101, %105, %cst_36 {dimension_numbers = #tpu.dot_dimension_numbers<[1], [0], [0], [1], [0, 0, 1, 1], [], []>} : vector<8x128xf32>, vector<128x512xf32>, vector<8x512xf32> -> vector<8x512xf32>
    %107 = arith.addf %104, %106 : vector<8x512xf32>
    %108 = vector.extract_strided_slice %107 {offsets = [0, 0], sizes = [8, 128], strides = [1, 1]} : vector<8x512xf32> to vector<8x128xf32>
    %109 = arith.negf %108 : vector<8x128xf32>
    %110 = math.exp %109 : vector<8x128xf32>
    %cst_37 = arith.constant 1.000000e+00 : f32
    %111 = vector.broadcast %cst_37 : f32 to vector<8x128xf32>
    %112 = arith.addf %111, %110 : vector<8x128xf32>
    %113 = arith.divf %111, %112 : vector<8x128xf32>
    %114 = vector.extract_strided_slice %107 {offsets = [0, 128], sizes = [8, 128], strides = [1, 1]} : vector<8x512xf32> to vector<8x128xf32>
    %115 = arith.negf %114 : vector<8x128xf32>
    %116 = math.exp %115 : vector<8x128xf32>
    %cst_38 = arith.constant 1.000000e+00 : f32
    %117 = vector.broadcast %cst_38 : f32 to vector<8x128xf32>
    %118 = arith.addf %117, %116 : vector<8x128xf32>
    %119 = arith.divf %117, %118 : vector<8x128xf32>
    %120 = vector.extract_strided_slice %107 {offsets = [0, 256], sizes = [8, 128], strides = [1, 1]} : vector<8x512xf32> to vector<8x128xf32>
    %121 = math.tanh %120 : vector<8x128xf32>
    %122 = vector.extract_strided_slice %107 {offsets = [0, 384], sizes = [8, 128], strides = [1, 1]} : vector<8x512xf32> to vector<8x128xf32>
    %123 = arith.negf %122 : vector<8x128xf32>
    %124 = math.exp %123 : vector<8x128xf32>
    %cst_39 = arith.constant 1.000000e+00 : f32
    %125 = vector.broadcast %cst_39 : f32 to vector<8x128xf32>
    %126 = arith.addf %125, %124 : vector<8x128xf32>
    %127 = arith.divf %125, %126 : vector<8x128xf32>
    %128 = arith.mulf %119, %99 : vector<8x128xf32>
    %129 = arith.mulf %113, %121 : vector<8x128xf32>
    %130 = arith.addf %128, %129 : vector<8x128xf32>
    %131 = math.tanh %130 : vector<8x128xf32>
    %132 = arith.mulf %127, %131 : vector<8x128xf32>
    %c4_i32 = arith.constant 4 : i32
    %c8_i32_40 = arith.constant 8 : i32
    %133 = arith.muli %c4_i32, %c8_i32_40 : i32
    %134 = arith.index_cast %133 : i32 to index
    %c0_41 = arith.constant 0 : index
    %135 = vector.load %arg7[%134, %c0_41] : memref<64x512xf32, #tpu.memory_space<vmem>>, vector<8x512xf32>
    %c0_42 = arith.constant 0 : index
    %c0_43 = arith.constant 0 : index
    %136 = vector.load %arg2[%c0_42, %c0_43] : memref<128x512xf32, #tpu.memory_space<vmem>>, vector<128x512xf32>
    %cst_44 = arith.constant dense<0.000000e+00> : vector<8x512xf32>
    %137 = tpu.matmul %132, %136, %cst_44 {dimension_numbers = #tpu.dot_dimension_numbers<[1], [0], [0], [1], [0, 0, 1, 1], [], []>} : vector<8x128xf32>, vector<128x512xf32>, vector<8x512xf32> -> vector<8x512xf32>
    %138 = arith.addf %135, %137 : vector<8x512xf32>
    %139 = vector.extract_strided_slice %138 {offsets = [0, 0], sizes = [8, 128], strides = [1, 1]} : vector<8x512xf32> to vector<8x128xf32>
    %140 = arith.negf %139 : vector<8x128xf32>
    %141 = math.exp %140 : vector<8x128xf32>
    %cst_45 = arith.constant 1.000000e+00 : f32
    %142 = vector.broadcast %cst_45 : f32 to vector<8x128xf32>
    %143 = arith.addf %142, %141 : vector<8x128xf32>
    %144 = arith.divf %142, %143 : vector<8x128xf32>
    %145 = vector.extract_strided_slice %138 {offsets = [0, 128], sizes = [8, 128], strides = [1, 1]} : vector<8x512xf32> to vector<8x128xf32>
    %146 = arith.negf %145 : vector<8x128xf32>
    %147 = math.exp %146 : vector<8x128xf32>
    %cst_46 = arith.constant 1.000000e+00 : f32
    %148 = vector.broadcast %cst_46 : f32 to vector<8x128xf32>
    %149 = arith.addf %148, %147 : vector<8x128xf32>
    %150 = arith.divf %148, %149 : vector<8x128xf32>
    %151 = vector.extract_strided_slice %138 {offsets = [0, 256], sizes = [8, 128], strides = [1, 1]} : vector<8x512xf32> to vector<8x128xf32>
    %152 = math.tanh %151 : vector<8x128xf32>
    %153 = vector.extract_strided_slice %138 {offsets = [0, 384], sizes = [8, 128], strides = [1, 1]} : vector<8x512xf32> to vector<8x128xf32>
    %154 = arith.negf %153 : vector<8x128xf32>
    %155 = math.exp %154 : vector<8x128xf32>
    %cst_47 = arith.constant 1.000000e+00 : f32
    %156 = vector.broadcast %cst_47 : f32 to vector<8x128xf32>
    %157 = arith.addf %156, %155 : vector<8x128xf32>
    %158 = arith.divf %156, %157 : vector<8x128xf32>
    %159 = arith.mulf %150, %130 : vector<8x128xf32>
    %160 = arith.mulf %144, %152 : vector<8x128xf32>
    %161 = arith.addf %159, %160 : vector<8x128xf32>
    %162 = math.tanh %161 : vector<8x128xf32>
    %163 = arith.mulf %158, %162 : vector<8x128xf32>
    %c5_i32 = arith.constant 5 : i32
    %c8_i32_48 = arith.constant 8 : i32
    %164 = arith.muli %c5_i32, %c8_i32_48 : i32
    %165 = arith.index_cast %164 : i32 to index
    %c0_49 = arith.constant 0 : index
    %166 = vector.load %arg7[%165, %c0_49] : memref<64x512xf32, #tpu.memory_space<vmem>>, vector<8x512xf32>
    %c0_50 = arith.constant 0 : index
    %c0_51 = arith.constant 0 : index
    %167 = vector.load %arg2[%c0_50, %c0_51] : memref<128x512xf32, #tpu.memory_space<vmem>>, vector<128x512xf32>
    %cst_52 = arith.constant dense<0.000000e+00> : vector<8x512xf32>
    %168 = tpu.matmul %163, %167, %cst_52 {dimension_numbers = #tpu.dot_dimension_numbers<[1], [0], [0], [1], [0, 0, 1, 1], [], []>} : vector<8x128xf32>, vector<128x512xf32>, vector<8x512xf32> -> vector<8x512xf32>
    %169 = arith.addf %166, %168 : vector<8x512xf32>
    %170 = vector.extract_strided_slice %169 {offsets = [0, 0], sizes = [8, 128], strides = [1, 1]} : vector<8x512xf32> to vector<8x128xf32>
    %171 = arith.negf %170 : vector<8x128xf32>
    %172 = math.exp %171 : vector<8x128xf32>
    %cst_53 = arith.constant 1.000000e+00 : f32
    %173 = vector.broadcast %cst_53 : f32 to vector<8x128xf32>
    %174 = arith.addf %173, %172 : vector<8x128xf32>
    %175 = arith.divf %173, %174 : vector<8x128xf32>
    %176 = vector.extract_strided_slice %169 {offsets = [0, 128], sizes = [8, 128], strides = [1, 1]} : vector<8x512xf32> to vector<8x128xf32>
    %177 = arith.negf %176 : vector<8x128xf32>
    %178 = math.exp %177 : vector<8x128xf32>
    %cst_54 = arith.constant 1.000000e+00 : f32
    %179 = vector.broadcast %cst_54 : f32 to vector<8x128xf32>
    %180 = arith.addf %179, %178 : vector<8x128xf32>
    %181 = arith.divf %179, %180 : vector<8x128xf32>
    %182 = vector.extract_strided_slice %169 {offsets = [0, 256], sizes = [8, 128], strides = [1, 1]} : vector<8x512xf32> to vector<8x128xf32>
    %183 = math.tanh %182 : vector<8x128xf32>
    %184 = vector.extract_strided_slice %169 {offsets = [0, 384], sizes = [8, 128], strides = [1, 1]} : vector<8x512xf32> to vector<8x128xf32>
    %185 = arith.negf %184 : vector<8x128xf32>
    %186 = math.exp %185 : vector<8x128xf32>
    %cst_55 = arith.constant 1.000000e+00 : f32
    %187 = vector.broadcast %cst_55 : f32 to vector<8x128xf32>
    %188 = arith.addf %187, %186 : vector<8x128xf32>
    %189 = arith.divf %187, %188 : vector<8x128xf32>
    %190 = arith.mulf %181, %161 : vector<8x128xf32>
    %191 = arith.mulf %175, %183 : vector<8x128xf32>
    %192 = arith.addf %190, %191 : vector<8x128xf32>
    %193 = math.tanh %192 : vector<8x128xf32>
    %194 = arith.mulf %189, %193 : vector<8x128xf32>
    %c6_i32 = arith.constant 6 : i32
    %c8_i32_56 = arith.constant 8 : i32
    %195 = arith.muli %c6_i32, %c8_i32_56 : i32
    %196 = arith.index_cast %195 : i32 to index
    %c0_57 = arith.constant 0 : index
    %197 = vector.load %arg7[%196, %c0_57] : memref<64x512xf32, #tpu.memory_space<vmem>>, vector<8x512xf32>
    %c0_58 = arith.constant 0 : index
    %c0_59 = arith.constant 0 : index
    %198 = vector.load %arg2[%c0_58, %c0_59] : memref<128x512xf32, #tpu.memory_space<vmem>>, vector<128x512xf32>
    %cst_60 = arith.constant dense<0.000000e+00> : vector<8x512xf32>
    %199 = tpu.matmul %194, %198, %cst_60 {dimension_numbers = #tpu.dot_dimension_numbers<[1], [0], [0], [1], [0, 0, 1, 1], [], []>} : vector<8x128xf32>, vector<128x512xf32>, vector<8x512xf32> -> vector<8x512xf32>
    %200 = arith.addf %197, %199 : vector<8x512xf32>
    %201 = vector.extract_strided_slice %200 {offsets = [0, 0], sizes = [8, 128], strides = [1, 1]} : vector<8x512xf32> to vector<8x128xf32>
    %202 = arith.negf %201 : vector<8x128xf32>
    %203 = math.exp %202 : vector<8x128xf32>
    %cst_61 = arith.constant 1.000000e+00 : f32
    %204 = vector.broadcast %cst_61 : f32 to vector<8x128xf32>
    %205 = arith.addf %204, %203 : vector<8x128xf32>
    %206 = arith.divf %204, %205 : vector<8x128xf32>
    %207 = vector.extract_strided_slice %200 {offsets = [0, 128], sizes = [8, 128], strides = [1, 1]} : vector<8x512xf32> to vector<8x128xf32>
    %208 = arith.negf %207 : vector<8x128xf32>
    %209 = math.exp %208 : vector<8x128xf32>
    %cst_62 = arith.constant 1.000000e+00 : f32
    %210 = vector.broadcast %cst_62 : f32 to vector<8x128xf32>
    %211 = arith.addf %210, %209 : vector<8x128xf32>
    %212 = arith.divf %210, %211 : vector<8x128xf32>
    %213 = vector.extract_strided_slice %200 {offsets = [0, 256], sizes = [8, 128], strides = [1, 1]} : vector<8x512xf32> to vector<8x128xf32>
    %214 = math.tanh %213 : vector<8x128xf32>
    %215 = vector.extract_strided_slice %200 {offsets = [0, 384], sizes = [8, 128], strides = [1, 1]} : vector<8x512xf32> to vector<8x128xf32>
    %216 = arith.negf %215 : vector<8x128xf32>
    %217 = math.exp %216 : vector<8x128xf32>
    %cst_63 = arith.constant 1.000000e+00 : f32
    %218 = vector.broadcast %cst_63 : f32 to vector<8x128xf32>
    %219 = arith.addf %218, %217 : vector<8x128xf32>
    %220 = arith.divf %218, %219 : vector<8x128xf32>
    %221 = arith.mulf %212, %192 : vector<8x128xf32>
    %222 = arith.mulf %206, %214 : vector<8x128xf32>
    %223 = arith.addf %221, %222 : vector<8x128xf32>
    %224 = math.tanh %223 : vector<8x128xf32>
    %225 = arith.mulf %220, %224 : vector<8x128xf32>
    %c7_i32 = arith.constant 7 : i32
    %c8_i32_64 = arith.constant 8 : i32
    %226 = arith.muli %c7_i32, %c8_i32_64 : i32
    %227 = arith.index_cast %226 : i32 to index
    %c0_65 = arith.constant 0 : index
    %228 = vector.load %arg7[%227, %c0_65] : memref<64x512xf32, #tpu.memory_space<vmem>>, vector<8x512xf32>
    %c0_66 = arith.constant 0 : index
    %c0_67 = arith.constant 0 : index
    %229 = vector.load %arg2[%c0_66, %c0_67] : memref<128x512xf32, #tpu.memory_space<vmem>>, vector<128x512xf32>
    %cst_68 = arith.constant dense<0.000000e+00> : vector<8x512xf32>
    %230 = tpu.matmul %225, %229, %cst_68 {dimension_numbers = #tpu.dot_dimension_numbers<[1], [0], [0], [1], [0, 0, 1, 1], [], []>} : vector<8x128xf32>, vector<128x512xf32>, vector<8x512xf32> -> vector<8x512xf32>
    %231 = arith.addf %228, %230 : vector<8x512xf32>
    %232 = vector.extract_strided_slice %231 {offsets = [0, 0], sizes = [8, 128], strides = [1, 1]} : vector<8x512xf32> to vector<8x128xf32>
    %233 = arith.negf %232 : vector<8x128xf32>
    %234 = math.exp %233 : vector<8x128xf32>
    %cst_69 = arith.constant 1.000000e+00 : f32
    %235 = vector.broadcast %cst_69 : f32 to vector<8x128xf32>
    %236 = arith.addf %235, %234 : vector<8x128xf32>
    %237 = arith.divf %235, %236 : vector<8x128xf32>
    %238 = vector.extract_strided_slice %231 {offsets = [0, 128], sizes = [8, 128], strides = [1, 1]} : vector<8x512xf32> to vector<8x128xf32>
    %239 = arith.negf %238 : vector<8x128xf32>
    %240 = math.exp %239 : vector<8x128xf32>
    %cst_70 = arith.constant 1.000000e+00 : f32
    %241 = vector.broadcast %cst_70 : f32 to vector<8x128xf32>
    %242 = arith.addf %241, %240 : vector<8x128xf32>
    %243 = arith.divf %241, %242 : vector<8x128xf32>
    %244 = vector.extract_strided_slice %231 {offsets = [0, 256], sizes = [8, 128], strides = [1, 1]} : vector<8x512xf32> to vector<8x128xf32>
    %245 = math.tanh %244 : vector<8x128xf32>
    %246 = vector.extract_strided_slice %231 {offsets = [0, 384], sizes = [8, 128], strides = [1, 1]} : vector<8x512xf32> to vector<8x128xf32>
    %247 = arith.negf %246 : vector<8x128xf32>
    %248 = math.exp %247 : vector<8x128xf32>
    %cst_71 = arith.constant 1.000000e+00 : f32
    %249 = vector.broadcast %cst_71 : f32 to vector<8x128xf32>
    %250 = arith.addf %249, %248 : vector<8x128xf32>
    %251 = arith.divf %249, %250 : vector<8x128xf32>
    %252 = arith.mulf %243, %223 : vector<8x128xf32>
    %253 = arith.mulf %237, %245 : vector<8x128xf32>
    %254 = arith.addf %252, %253 : vector<8x128xf32>
    %255 = math.tanh %254 : vector<8x128xf32>
    %256 = arith.mulf %251, %255 : vector<8x128xf32>
    %c8_i32_72 = arith.constant 8 : i32
    %c0_73 = arith.constant 0 : index
    %c0_74 = arith.constant 0 : index
    %257 = vector.load %arg4[%c0_73, %c0_74] : memref<128x128xf32, #tpu.memory_space<vmem>>, vector<128x128xf32>
    %cst_75 = arith.constant dense<0.000000e+00> : vector<8x128xf32>
    %258 = tpu.matmul %256, %257, %cst_75 {dimension_numbers = #tpu.dot_dimension_numbers<[1], [0], [0], [1], [0, 0, 1, 1], [], []>} : vector<8x128xf32>, vector<128x128xf32>, vector<8x128xf32> -> vector<8x128xf32>
    %c0_76 = arith.constant 0 : index
    %c0_77 = arith.constant 0 : index
    %259 = vector.load %arg5[%c0_76, %c0_77] : memref<1x128xf32, #tpu.memory_space<vmem>>, vector<1x128xf32>
    %260 = vector.broadcast %259 : vector<1x128xf32> to vector<8x128xf32>
    %261 = arith.addf %258, %260 : vector<8x128xf32>
    %c0_78 = arith.constant 0 : index
    %c0_79 = arith.constant 0 : index
    %262 = vector.load %arg6[%c0_78, %c0_79] : memref<8x128xf32, #tpu.memory_space<vmem>>, vector<8x128xf32>
    tpu.vector_store %arg6[%c0_78, %c0_79], %261 {strides = array<i32>} : memref<8x128xf32, #tpu.memory_space<vmem>>, vector<8x128xf32>,
    return
  }
}

</mosaic_0001>

<llo_original>
// kernel: tpu_custom_call.1
$region0: #{tpu_custom_call.1}
  #allocation0 [shape = 'u32[]', space=smem, size = 0x4, offset = 0x4, fixed_abs, tag = 'smem constant byte address 0x4 - core index']
  #allocation1 [shape = 'u32[144,128]{1,0:T(1,128)}', space=vmem, size = 0x12000, scoped, tag = 'internal scratch']
  #allocation2 [shape = 'f32[64,512]{1,0:T(8,128)}', space=vmem, size = 0x20000, scoped, tag = 'scratch operand']
  %s0 = inlined_call_operand.vmem [shape: f32[64,1], index: 0, kind: input, shape index: {}]
  %s1 = inlined_call_operand.vmem [shape: f32[1,512], index: 1, kind: input, shape index: {}]
  %s2 = inlined_call_operand.hbm [shape: f32[128,512], index: 2, kind: input, shape index: {}]
  %s3 = inlined_call_operand.vmem [shape: f32[1,512], index: 3, kind: input, shape index: {}]
  %s4 = inlined_call_operand.hbm [shape: f32[128,128], index: 4, kind: input, shape index: {}]
  %s5 = inlined_call_operand.vmem [shape: f32[1,128], index: 5, kind: input, shape index: {}]
  %s6 = inlined_call_operand.hbm [shape: f32[8,128], index: 6, kind: output, shape index: {}]
  %s7 = sld [smem:[#allocation0]]
  $region42: #{tpu_custom_call.1} parent=0
    _
  %s9 = ssub.s32 1, %s7
  %s10 = scalar_select 0, %s9, %s7
  $region1: #{tpu_custom_call.1} parent=0
    #allocation3 [shape = 'u8[262144]{0}', space=vmem, size = 0x40000, scoped, tag = 'input window, operand 2, single buffered']
    #allocation4 [shape = 's32[1]{0}', space=sflag, size = 0x4, scoped, tag = 'scoped memory for tpu_custom_call.1']
    #allocation5 [shape = 's32[1]{0}', space=sflag, size = 0x4, scoped, tag = 'scoped memory for tpu_custom_call.1']
    #allocation6 [shape = 'u8[65536]{0}', space=vmem, size = 0x10000, scoped, tag = 'input window, operand 4, single buffered']
    #allocation7 [shape = 's32[1]{0}', space=sflag, size = 0x4, scoped, tag = 'scoped memory for tpu_custom_call.1']
    #allocation8 [shape = 'u8[4096]{0}', space=vmem, size = 0x1000, scoped, tag = 'output window, operand 0, single buffered']
    %11 = vsyncpa [#allocation4], 0
    %12 = vsyncpa [#allocation7], 0
    %13 = vsyncpa [#allocation5], 0
    // Predicated region
    $region2: #{tpu_custom_call.1} parent=1 // pred_check
      _
    $region3: #{tpu_custom_call.1} parent=1 // pred_check_branch
      %15 = sbr.rel (0) target = $region5
    $region4: #{tpu_custom_call.1} parent=1 // pred_region
      _
    $region5: #{tpu_custom_call.1} parent=1 // pred_fallthru
      _
    // Predicated region
    $region6: #{tpu_custom_call.1} parent=1 // pred_check
      _
    $region7: #{tpu_custom_call.1} parent=1 // pred_check_branch
      %17 = sbr.rel (0) target = $region9
    $region8: #{tpu_custom_call.1} parent=1 // pred_region
      _
    $region9: #{tpu_custom_call.1} parent=1 // pred_fallthru
      _
    // Predicated region
    $region10: #{tpu_custom_call.1} parent=1 // pred_check
      _
    $region11: #{tpu_custom_call.1} parent=1 // pred_check_branch
      %19 = sbr.rel (0) target = $region13
    $region12: #{tpu_custom_call.1} parent=1 // pred_region
      %s21 = ssub.s32 8192, 8192
      %22 = vsyncadd [#allocation4], %s21
      %s23 = sshll.u32 [#allocation3], 4
      %s24 = int_to_ptr.vmem [resolvable:$true] %s23
      %29 = dma.hbm_to_vmem [thread:$0]  %s2, 8192, %s24, [#allocation4], 512, 512, 32
    $region13: #{tpu_custom_call.1} parent=1 // pred_fallthru
      _
    // Predicated region
    $region14: #{tpu_custom_call.1} parent=1 // pred_check
      _
    $region15: #{tpu_custom_call.1} parent=1 // pred_check_branch
      %31 = sbr.rel (0) target = $region17
    $region16: #{tpu_custom_call.1} parent=1 // pred_region
      _
    $region17: #{tpu_custom_call.1} parent=1 // pred_fallthru
      _
    // Predicated region
    $region18: #{tpu_custom_call.1} parent=1 // pred_check
      _
    $region19: #{tpu_custom_call.1} parent=1 // pred_check_branch
      %33 = sbr.rel (0) target = $region21
    $region20: #{tpu_custom_call.1} parent=1 // pred_region
      %s35 = ssub.s32 2048, 2048
      %36 = vsyncadd [#allocation7], %s35
      %s37 = sshll.u32 [#allocation6], 4
      %s38 = int_to_ptr.vmem [resolvable:$true] %s37
      %43 = dma.hbm_to_vmem [thread:$0]  %s4, 2048, %s38, [#allocation7], 128, 128, 8
    $region21: #{tpu_custom_call.1} parent=1 // pred_fallthru
      _
    // Predicated region
    $region22: #{tpu_custom_call.1} parent=1 // pred_check
      _
    $region23: #{tpu_custom_call.1} parent=1 // pred_check_branch
      %45 = sbr.rel (0) target = $region25
    $region24: #{tpu_custom_call.1} parent=1 // pred_region
      _
    $region25: #{tpu_custom_call.1} parent=1 // pred_fallthru
      _
    // Predicated region
    $region26: #{tpu_custom_call.1} parent=1 // pred_check
      _
    $region27: #{tpu_custom_call.1} parent=1 // pred_check_branch
      %47 = sbr.rel (0) target = $region29
    $region28: #{tpu_custom_call.1} parent=1 // pred_region
      %48 = dma.done [#allocation4], 8192
    $region29: #{tpu_custom_call.1} parent=1 // pred_fallthru
      _
    // Predicated region
    $region30: #{tpu_custom_call.1} parent=1 // pred_check
      _
    $region31: #{tpu_custom_call.1} parent=1 // pred_check_branch
      %50 = sbr.rel (0) target = $region33
    $region32: #{tpu_custom_call.1} parent=1 // pred_region
      %51 = dma.done [#allocation7], 2048
    $region33: #{tpu_custom_call.1} parent=1 // pred_fallthru
      _
    %v52 = vld [vmem:[%s0] sm:$0xff]
    %v53 = vld [vmem:[%s0 + $0x8] sm:$0xff]
    %v54 = vld [vmem:[%s0 + $0x10] sm:$0xff]
    %v55 = vld [vmem:[%s0 + $0x18] sm:$0xff]
    %v56 = vld [vmem:[%s0 + $0x20] sm:$0xff]
    %v57 = vld [vmem:[%s0 + $0x28] sm:$0xff]
    %v58 = vld [vmem:[%s0 + $0x30] sm:$0xff]
    %v59 = vld [vmem:[%s0 + $0x38] sm:$0xff]
    %v60 = vld [vmem:[%s1] sm:$0xf]
    %v61 = vld [vmem:[%s3] sm:$0xf]
    %v63 = vlaneseq
    %v64 = vshrl.u32 %v63, 7
    %v65 = vsub.s32 0, %v64
    %v66 = vrot.slane %v61, %v65
    %v67 = vlaneseq
    %v68 = vshrl.u32 %v67, 7
    %v69 = vsub.s32 1, %v68
    %v70 = vrot.slane %v61, %v69
    %v71 = vlaneseq
    %v72 = vshrl.u32 %v71, 7
    %v73 = vsub.s32 2, %v72
    %v74 = vrot.slane %v61, %v73
    %v75 = vlaneseq
    %v76 = vshrl.u32 %v75, 7
    %v77 = vsub.s32 3, %v76
    %v78 = vrot.slane %v61, %v77
    %v84 = vlaneseq
    %v85 = vshrl.u32 %v84, 7
    %v86 = vsub.s32 0, %v85
    %v87 = vrot.slane %v60, %v86
    %v88 = vlaneseq
    %v89 = vshrl.u32 %v88, 7
    %v90 = vsub.s32 1, %v89
    %v91 = vrot.slane %v60, %v90
    %v92 = vlaneseq
    %v93 = vshrl.u32 %v92, 7
    %v94 = vsub.s32 2, %v93
    %v95 = vrot.slane %v60, %v94
    %v96 = vlaneseq
    %v97 = vshrl.u32 %v96, 7
    %v98 = vsub.s32 3, %v97
    %v99 = vrot.slane %v60, %v98
    %vm100 = vcmask 7168
    %v102 = vsel %vm100, %v52, 0
    %v105 = vsel %vm100, %v53, 0
    %v108 = vsel %vm100, %v54, 0
    %v111 = vsel %vm100, %v55, 0
    %v114 = vsel %vm100, %v56, 0
    %v117 = vsel %vm100, %v57, 0
    %v120 = vsel %vm100, %v58, 0
    %v123 = vsel %vm100, %v59, 0
    %vm125 = vcmask 1040384
    %v126 = vsel %vm125, %v87, 0
    %v128 = vsel %vm125, %v91, 0
    %v130 = vsel %vm125, %v95, 0
    %v132 = vsel %vm125, %v99, 0
    %134 = vmatprep.subr.mxu0 %v128
    %135 = vmatpush1.msra.mxu0 %v126
    %136 = vmatprep.subr.mxu0 0.0
    %137 = vmatpush1.msra.mxu0 0.0
    %138 = vmatprep.subr.mxu0 0.0
    %139 = vmatpush1.msra.mxu0 0.0
    %140 = vmatprep.subr.mxu0 0.0
    %141 = vmatpush1.msra.mxu0 0.0
    %142 = vmatprep.subr.mxu0 0.0
    %143 = vmatpush1.msra.mxu0 0.0
    %144 = vmatprep.subr.mxu0 0.0
    %145 = vmatpush1.msra.mxu0 0.0
    %146 = vmatprep.subr.mxu0 0.0
    %147 = vmatpush1.msra.mxu0 0.0
    %148 = vmatprep.subr.mxu0 0.0
    %149 = vmatpush1.msra.mxu0 0.0
    %150 = vmatprep.subr.mxu0 0.0
    %151 = vmatpush1.msra.mxu0 0.0
    %152 = vmatprep.subr.mxu0 0.0
    %153 = vmatpush1.msra.mxu0 0.0
    %154 = vmatprep.subr.mxu0 0.0
    %155 = vmatpush1.msra.mxu0 0.0
    %156 = vmatprep.subr.mxu0 0.0
    %157 = vmatpush1.msra.mxu0 0.0
    %158 = vmatprep.subr.mxu0 0.0
    %159 = vmatpush1.msra.mxu0 0.0
    %160 = vmatprep.subr.mxu0 0.0
    %161 = vmatpush1.msra.mxu0 0.0
    %162 = vmatprep.subr.mxu0 0.0
    %163 = vmatpush1.msra.mxu0 0.0
    %164 = vmatprep.subr.mxu0 0.0
    %165 = vmatpush1.msra.mxu0 0.0
    %166 = vmatprep.subr.mxu0 0.0
    %167 = vmatpush1.msra.mxu0 0.0
    %168 = vmatprep.subr.mxu0 0.0
    %169 = vmatpush1.msra.mxu0 0.0
    %170 = vmatprep.subr.mxu0 0.0
    %171 = vmatpush1.msra.mxu0 0.0
    %172 = vmatprep.subr.mxu0 0.0
    %173 = vmatpush1.msra.mxu0 0.0
    %174 = vmatprep.subr.mxu0 0.0
    %175 = vmatpush1.msra.mxu0 0.0
    %176 = vmatprep.subr.mxu0 0.0
    %177 = vmatpush1.msra.mxu0 0.0
    %178 = vmatprep.subr.mxu0 0.0
    %179 = vmatpush1.msra.mxu0 0.0
    %180 = vmatprep.subr.mxu0 0.0
    %181 = vmatpush1.msra.mxu0 0.0
    %182 = vmatprep.subr.mxu0 0.0
    %183 = vmatpush1.msra.mxu0 0.0
    %184 = vmatprep.subr.mxu0 0.0
    %185 = vmatpush1.msra.mxu0 0.0
    %186 = vmatprep.subr.mxu0 0.0
    %187 = vmatpush1.msra.mxu0 0.0
    %188 = vmatprep.subr.mxu0 0.0
    %189 = vmatpush1.msra.mxu0 0.0
    %190 = vmatprep.subr.mxu0 0.0
    %191 = vmatpush1.msra.mxu0 0.0
    %192 = vmatprep.subr.mxu0 0.0
    %193 = vmatpush1.msra.mxu0 0.0
    %194 = vmatprep.subr.mxu0 0.0
    %195 = vmatpush1.msra.mxu0 0.0
    %196 = vmatprep.subr.mxu0 0.0
    %197 = vmatpush1.msra.mxu0 0.0
    %198 = vmatprep.mubr.f32.mxu0 0.0
    %199 = vmatmul.mubr.f32.gmra.mrb[0].mxu0 %v102
    %v200 = vpop.f32.mrb[0].mxu0
    %v201 = vadd.f32 %v66, %v200
    %v202 = vpop.f32.mrb[0].mxu0
    %v203 = vadd.f32 %v70, %v202
    %204 = vmatprep.mubr.f32.mxu0 0.0
    %205 = vmatmul.mubr.f32.gmra.mrb[0].mxu0 %v105
    %v206 = vpop.f32.mrb[0].mxu0
    %v207 = vadd.f32 %v66, %v206
    %v208 = vpop.f32.mrb[0].mxu0
    %v209 = vadd.f32 %v70, %v208
    %210 = vmatprep.mubr.f32.mxu0 0.0
    %211 = vmatmul.mubr.f32.gmra.mrb[0].mxu0 %v108
    %v212 = vpop.f32.mrb[0].mxu0
    %v213 = vadd.f32 %v66, %v212
    %v214 = vpop.f32.mrb[0].mxu0
    %v215 = vadd.f32 %v70, %v214
    %216 = vmatprep.mubr.f32.mxu0 0.0
    %217 = vmatmul.mubr.f32.gmra.mrb[0].mxu0 %v111
    %v218 = vpop.f32.mrb[0].mxu0
    %v219 = vadd.f32 %v66, %v218
    %v220 = vpop.f32.mrb[0].mxu0
    %v221 = vadd.f32 %v70, %v220
    %222 = vmatprep.mubr.f32.mxu0 0.0
    %223 = vmatmul.mubr.f32.gmra.mrb[0].mxu0 %v114
    %v224 = vpop.f32.mrb[0].mxu0
    %v225 = vadd.f32 %v66, %v224
    %v226 = vpop.f32.mrb[0].mxu0
    %v227 = vadd.f32 %v70, %v226
    %228 = vmatprep.mubr.f32.mxu0 0.0
    %229 = vmatmul.mubr.f32.gmra.mrb[0].mxu0 %v117
    %v230 = vpop.f32.mrb[0].mxu0
    %v231 = vadd.f32 %v66, %v230
    %v232 = vpop.f32.mrb[0].mxu0
    %v233 = vadd.f32 %v70, %v232
    %234 = vmatprep.mubr.f32.mxu0 0.0
    %235 = vmatmul.mubr.f32.gmra.mrb[0].mxu0 %v120
    %v236 = vpop.f32.mrb[0].mxu0
    %v237 = vadd.f32 %v66, %v236
    %v238 = vpop.f32.mrb[0].mxu0
    %v239 = vadd.f32 %v70, %v238
    %240 = vmatprep.mubr.f32.mxu0 0.0
    %241 = vmatmul.mubr.f32.gmra.mrb[0].mxu0 %v123
    %v242 = vpop.f32.mrb[0].mxu0
    %v243 = vadd.f32 %v66, %v242
    %v244 = vpop.f32.mrb[0].mxu0
    %v245 = vadd.f32 %v70, %v244
    %246 = vdwg.mxu0
    %247 = vmatprep.subr.mxu0 %v132
    %248 = vmatpush1.msra.mxu0 %v130
    %249 = vmatprep.subr.mxu0 0.0
    %250 = vmatpush1.msra.mxu0 0.0
    %251 = vmatprep.subr.mxu0 0.0
    %252 = vmatpush1.msra.mxu0 0.0
    %253 = vmatprep.subr.mxu0 0.0
    %254 = vmatpush1.msra.mxu0 0.0
    %255 = vmatprep.subr.mxu0 0.0
    %256 = vmatpush1.msra.mxu0 0.0
    %257 = vmatprep.subr.mxu0 0.0
    %258 = vmatpush1.msra.mxu0 0.0
    %259 = vmatprep.subr.mxu0 0.0
    %260 = vmatpush1.msra.mxu0 0.0
    %261 = vmatprep.subr.mxu0 0.0
    %262 = vmatpush1.msra.mxu0 0.0
    %263 = vmatprep.subr.mxu0 0.0
    %264 = vmatpush1.msra.mxu0 0.0
    %265 = vmatprep.subr.mxu0 0.0
    %266 = vmatpush1.msra.mxu0 0.0
    %267 = vmatprep.subr.mxu0 0.0
    %268 = vmatpush1.msra.mxu0 0.0
    %269 = vmatprep.subr.mxu0 0.0
    %270 = vmatpush1.msra.mxu0 0.0
    %271 = vmatprep.subr.mxu0 0.0
    %272 = vmatpush1.msra.mxu0 0.0
    %273 = vmatprep.subr.mxu0 0.0
    %274 = vmatpush1.msra.mxu0 0.0
    %275 = vmatprep.subr.mxu0 0.0
    %276 = vmatpush1.msra.mxu0 0.0
    %277 = vmatprep.subr.mxu0 0.0
    %278 = vmatpush1.msra.mxu0 0.0
    %279 = vmatprep.subr.mxu0 0.0
    %280 = vmatpush1.msra.mxu0 0.0
    %281 = vmatprep.subr.mxu0 0.0
    %282 = vmatpush1.msra.mxu0 0.0
    %283 = vmatprep.subr.mxu0 0.0
    %284 = vmatpush1.msra.mxu0 0.0
    %285 = vmatprep.subr.mxu0 0.0
    %286 = vmatpush1.msra.mxu0 0.0
    %287 = vmatprep.subr.mxu0 0.0
    %288 = vmatpush1.msra.mxu0 0.0
    %289 = vmatprep.subr.mxu0 0.0
    %290 = vmatpush1.msra.mxu0 0.0
    %291 = vmatprep.subr.mxu0 0.0
    %292 = vmatpush1.msra.mxu0 0.0
    %293 = vmatprep.subr.mxu0 0.0
    %294 = vmatpush1.msra.mxu0 0.0
    %295 = vmatprep.subr.mxu0 0.0
    %296 = vmatpush1.msra.mxu0 0.0
    %297 = vmatprep.subr.mxu0 0.0
    %298 = vmatpush1.msra.mxu0 0.0
    %299 = vmatprep.subr.mxu0 0.0
    %300 = vmatpush1.msra.mxu0 0.0
    %301 = vmatprep.subr.mxu0 0.0
    %302 = vmatpush1.msra.mxu0 0.0
    %303 = vmatprep.subr.mxu0 0.0
    %304 = vmatpush1.msra.mxu0 0.0
    %305 = vmatprep.subr.mxu0 0.0
    %306 = vmatpush1.msra.mxu0 0.0
    %307 = vmatprep.subr.mxu0 0.0
    %308 = vmatpush1.msra.mxu0 0.0
    %309 = vmatprep.subr.mxu0 0.0
    %310 = vmatpush1.msra.mxu0 0.0
    %311 = vmatprep.mubr.f32.mxu0 0.0
    %312 = vmatmul.mubr.f32.gmra.mrb[0].mxu0 %v102
    %v313 = vpop.f32.mrb[0].mxu0
    %v314 = vadd.f32 %v74, %v313
    %v315 = vpop.f32.mrb[0].mxu0
    %v316 = vadd.f32 %v78, %v315
    %317 = vmatprep.mubr.f32.mxu0 0.0
    %318 = vmatmul.mubr.f32.gmra.mrb[0].mxu0 %v105
    %v319 = vpop.f32.mrb[0].mxu0
    %v320 = vadd.f32 %v74, %v319
    %v321 = vpop.f32.mrb[0].mxu0
    %v322 = vadd.f32 %v78, %v321
    %323 = vmatprep.mubr.f32.mxu0 0.0
    %324 = vmatmul.mubr.f32.gmra.mrb[0].mxu0 %v108
    %v325 = vpop.f32.mrb[0].mxu0
    %v326 = vadd.f32 %v74, %v325
    %v327 = vpop.f32.mrb[0].mxu0
    %v328 = vadd.f32 %v78, %v327
    %329 = vmatprep.mubr.f32.mxu0 0.0
    %330 = vmatmul.mubr.f32.gmra.mrb[0].mxu0 %v111
    %v331 = vpop.f32.mrb[0].mxu0
    %v332 = vadd.f32 %v74, %v331
    %v333 = vpop.f32.mrb[0].mxu0
    %v334 = vadd.f32 %v78, %v333
    %335 = vmatprep.mubr.f32.mxu0 0.0
    %336 = vmatmul.mubr.f32.gmra.mrb[0].mxu0 %v114
    %v337 = vpop.f32.mrb[0].mxu0
    %v338 = vadd.f32 %v74, %v337
    %v339 = vpop.f32.mrb[0].mxu0
    %v340 = vadd.f32 %v78, %v339
    %341 = vmatprep.mubr.f32.mxu0 0.0
    %342 = vmatmul.mubr.f32.gmra.mrb[0].mxu0 %v117
    %v343 = vpop.f32.mrb[0].mxu0
    %v344 = vadd.f32 %v74, %v343
    %v345 = vpop.f32.mrb[0].mxu0
    %v346 = vadd.f32 %v78, %v345
    %347 = vmatprep.mubr.f32.mxu0 0.0
    %348 = vmatmul.mubr.f32.gmra.mrb[0].mxu0 %v120
    %v349 = vpop.f32.mrb[0].mxu0
    %v350 = vadd.f32 %v74, %v349
    %v351 = vpop.f32.mrb[0].mxu0
    %v352 = vadd.f32 %v78, %v351
    %353 = vmatprep.mubr.f32.mxu0 0.0
    %354 = vmatmul.mubr.f32.gmra.mrb[0].mxu0 %v123
    %v355 = vpop.f32.mrb[0].mxu0
    %v356 = vadd.f32 %v74, %v355
    %v357 = vpop.f32.mrb[0].mxu0
    %v358 = vadd.f32 %v78, %v357
    %359 = vdwg.mxu0
    %360 = vst [vmem:[#allocation2] sm:$0xff] %v201
    %361 = vst [vmem:[#allocation2 + $0x8] sm:$0xff] %v203
    %362 = vst [vmem:[#allocation2 + $0x10] sm:$0xff] %v314
    %363 = vst [vmem:[#allocation2 + $0x18] sm:$0xff] %v316
    %364 = vst [vmem:[#allocation2 + $0x20] sm:$0xff] %v207
    %365 = vst [vmem:[#allocation2 + $0x28] sm:$0xff] %v209
    %366 = vst [vmem:[#allocation2 + $0x30] sm:$0xff] %v320
    %367 = vst [vmem:[#allocation2 + $0x38] sm:$0xff] %v322
    %368 = vst [vmem:[#allocation2 + $0x40] sm:$0xff] %v213
    %369 = vst [vmem:[#allocation2 + $0x48] sm:$0xff] %v215
    %370 = vst [vmem:[#allocation2 + $0x50] sm:$0xff] %v326
    %371 = vst [vmem:[#allocation2 + $0x58] sm:$0xff] %v328
    %372 = vst [vmem:[#allocation2 + $0x60] sm:$0xff] %v219
    %373 = vst [vmem:[#allocation2 + $0x68] sm:$0xff] %v221
    %374 = vst [vmem:[#allocation2 + $0x70] sm:$0xff] %v332
    %375 = vst [vmem:[#allocation2 + $0x78] sm:$0xff] %v334
    %376 = vst [vmem:[#allocation2 + $0x80] sm:$0xff] %v225
    %377 = vst [vmem:[#allocation2 + $0x88] sm:$0xff] %v227
    %378 = vst [vmem:[#allocation2 + $0x90] sm:$0xff] %v338
    %379 = vst [vmem:[#allocation2 + $0x98] sm:$0xff] %v340
    %380 = vst [vmem:[#allocation2 + $0xa0] sm:$0xff] %v231
    %381 = vst [vmem:[#allocation2 + $0xa8] sm:$0xff] %v233
    %382 = vst [vmem:[#allocation2 + $0xb0] sm:$0xff] %v344
    %383 = vst [vmem:[#allocation2 + $0xb8] sm:$0xff] %v346
    %384 = vst [vmem:[#allocation2 + $0xc0] sm:$0xff] %v237
    %385 = vst [vmem:[#allocation2 + $0xc8] sm:$0xff] %v239
    %386 = vst [vmem:[#allocation2 + $0xd0] sm:$0xff] %v350
    %387 = vst [vmem:[#allocation2 + $0xd8] sm:$0xff] %v352
    %388 = vst [vmem:[#allocation2 + $0xe0] sm:$0xff] %v243
    %389 = vst [vmem:[#allocation2 + $0xe8] sm:$0xff] %v245
    %390 = vst [vmem:[#allocation2 + $0xf0] sm:$0xff] %v356
    %391 = vst [vmem:[#allocation2 + $0xf8] sm:$0xff] %v358
    %v392 = vld [vmem:[#allocation2] sm:$0xff]
    %v393 = vld [vmem:[#allocation2 + $0x8] sm:$0xff]
    %v394 = vld [vmem:[#allocation2 + $0x10] sm:$0xff]
    %v395 = vld [vmem:[#allocation2 + $0x18] sm:$0xff]
    %v396 = vld [vmem:[#allocation3] sm:$0xff]
    %v397 = vld [vmem:[#allocation3 + $0x8] sm:$0xff]
    %v398 = vld [vmem:[#allocation3 + $0x10] sm:$0xff]
    %v399 = vld [vmem:[#allocation3 + $0x18] sm:$0xff]
    %v400 = vld [vmem:[#allocation3 + $0x20] sm:$0xff]
    %v401 = vld [vmem:[#allocation3 + $0x28] sm:$0xff]
    %v402 = vld [vmem:[#allocation3 + $0x30] sm:$0xff]
    %v403 = vld [vmem:[#allocation3 + $0x38] sm:$0xff]
    %v404 = vld [vmem:[#allocation3 + $0x40] sm:$0xff]
    %v405 = vld [vmem:[#allocation3 + $0x48] sm:$0xff]
    %v406 = vld [vmem:[#allocation3 + $0x50] sm:$0xff]
    %v407 = vld [vmem:[#allocation3 + $0x58] sm:$0xff]
    %v408 = vld [vmem:[#allocation3 + $0x60] sm:$0xff]
    %v409 = vld [vmem:[#allocation3 + $0x68] sm:$0xff]
    %v410 = vld [vmem:[#allocation3 + $0x70] sm:$0xff]
    %v411 = vld [vmem:[#allocation3 + $0x78] sm:$0xff]
    %v412 = vld [vmem:[#allocation3 + $0x80] sm:$0xff]
    %v413 = vld [vmem:[#allocation3 + $0x88] sm:$0xff]
    %v414 = vld [vmem:[#allocation3 + $0x90] sm:$0xff]
    %v415 = vld [vmem:[#allocation3 + $0x98] sm:$0xff]
    %v416 = vld [vmem:[#allocation3 + $0xa0] sm:$0xff]
    %v417 = vld [vmem:[#allocation3 + $0xa8] sm:$0xff]
    %v418 = vld [vmem:[#allocation3 + $0xb0] sm:$0xff]
    %v419 = vld [vmem:[#allocation3 + $0xb8] sm:$0xff]
    %v420 = vld [vmem:[#allocation3 + $0xc0] sm:$0xff]
    %v421 = vld [vmem:[#allocation3 + $0xc8] sm:$0xff]
    %v422 = vld [vmem:[#allocation3 + $0xd0] sm:$0xff]
    %v423 = vld [vmem:[#allocation3 + $0xd8] sm:$0xff]
    %v424 = vld [vmem:[#allocation3 + $0xe0] sm:$0xff]
    %v425 = vld [vmem:[#allocation3 + $0xe8] sm:$0xff]
    %v426 = vld [vmem:[#allocation3 + $0xf0] sm:$0xff]
    %v427 = vld [vmem:[#allocation3 + $0xf8] sm:$0xff]
    %v428 = vld [vmem:[#allocation3 + $0x100] sm:$0xff]
    %v429 = vld [vmem:[#allocation3 + $0x108] sm:$0xff]
    %v430 = vld [vmem:[#allocation3 + $0x110] sm:$0xff]
    %v431 = vld [vmem:[#allocation3 + $0x118] sm:$0xff]
    %v432 = vld [vmem:[#allocation3 + $0x120] sm:$0xff]
    %v433 = vld [vmem:[#allocation3 + $0x128] sm:$0xff]
    %v434 = vld [vmem:[#allocation3 + $0x130] sm:$0xff]
    %v435 = vld [vmem:[#allocation3 + $0x138] sm:$0xff]
    %v436 = vld [vmem:[#allocation3 + $0x140] sm:$0xff]
    %v437 = vld [vmem:[#allocation3 + $0x148] sm:$0xff]
    %v438 = vld [vmem:[#allocation3 + $0x150] sm:$0xff]
    %v439 = vld [vmem:[#allocation3 + $0x158] sm:$0xff]
    %v440 = vld [vmem:[#allocation3 + $0x160] sm:$0xff]
    %v441 = vld [vmem:[#allocation3 + $0x168] sm:$0xff]
    %v442 = vld [vmem:[#allocation3 + $0x170] sm:$0xff]
    %v443 = vld [vmem:[#allocation3 + $0x178] sm:$0xff]
    %v444 = vld [vmem:[#allocation3 + $0x180] sm:$0xff]
    %v445 = vld [vmem:[#allocation3 + $0x188] sm:$0xff]
    %v446 = vld [vmem:[#allocation3 + $0x190] sm:$0xff]
    %v447 = vld [vmem:[#allocation3 + $0x198] sm:$0xff]
    %v448 = vld [vmem:[#allocation3 + $0x1a0] sm:$0xff]
    %v449 = vld [vmem:[#allocation3 + $0x1a8] sm:$0xff]
    %v450 = vld [vmem:[#allocation3 + $0x1b0] sm:$0xff]
    %v451 = vld [vmem:[#allocation3 + $0x1b8] sm:$0xff]
    %v452 = vld [vmem:[#allocation3 + $0x1c0] sm:$0xff]
    %v453 = vld [vmem:[#allocation3 + $0x1c8] sm:$0xff]
    %v454 = vld [vmem:[#allocation3 + $0x1d0] sm:$0xff]
    %v455 = vld [vmem:[#allocation3 + $0x1d8] sm:$0xff]
    %v456 = vld [vmem:[#allocation3 + $0x1e0] sm:$0xff]
    %v457 = vld [vmem:[#allocation3 + $0x1e8] sm:$0xff]
    %v458 = vld [vmem:[#allocation3 + $0x1f0] sm:$0xff]
    %v459 = vld [vmem:[#allocation3 + $0x1f8] sm:$0xff]
    %460 = vmatprep.subr.mxu0 %v397
    %461 = vmatpush1.msra.mxu0 %v396
    %462 = vmatprep.subr.mxu0 %v401
    %463 = vmatpush1.msra.mxu0 %v400
    %464 = vmatprep.subr.mxu0 %v405
    %465 = vmatpush1.msra.mxu0 %v404
    %466 = vmatprep.subr.mxu0 %v409
    %467 = vmatpush1.msra.mxu0 %v408
    %468 = vmatprep.subr.mxu0 %v413
    %469 = vmatpush1.msra.mxu0 %v412
    %470 = vmatprep.subr.mxu0 %v417
    %471 = vmatpush1.msra.mxu0 %v416
    %472 = vmatprep.subr.mxu0 %v421
    %473 = vmatpush1.msra.mxu0 %v420
    %474 = vmatprep.subr.mxu0 %v425
    %475 = vmatpush1.msra.mxu0 %v424
    %476 = vmatprep.subr.mxu0 %v429
    %477 = vmatpush1.msra.mxu0 %v428
    %478 = vmatprep.subr.mxu0 %v433
    %479 = vmatpush1.msra.mxu0 %v432
    %480 = vmatprep.subr.mxu0 %v437
    %481 = vmatpush1.msra.mxu0 %v436
    %482 = vmatprep.subr.mxu0 %v441
    %483 = vmatpush1.msra.mxu0 %v440
    %484 = vmatprep.subr.mxu0 %v445
    %485 = vmatpush1.msra.mxu0 %v444
    %486 = vmatprep.subr.mxu0 %v449
    %487 = vmatpush1.msra.mxu0 %v448
    %488 = vmatprep.subr.mxu0 %v453
    %489 = vmatpush1.msra.mxu0 %v452
    %490 = vmatprep.subr.mxu0 %v457
    %491 = vmatpush1.msra.mxu0 %v456
    %492 = vmatprep.subr.mxu0 0.0
    %493 = vmatpush1.msra.mxu0 0.0
    %494 = vmatprep.subr.mxu0 0.0
    %495 = vmatpush1.msra.mxu0 0.0
    %496 = vmatprep.subr.mxu0 0.0
    %497 = vmatpush1.msra.mxu0 0.0
    %498 = vmatprep.subr.mxu0 0.0
    %499 = vmatpush1.msra.mxu0 0.0
    %500 = vmatprep.subr.mxu0 0.0
    %501 = vmatpush1.msra.mxu0 0.0
    %502 = vmatprep.subr.mxu0 0.0
    %503 = vmatpush1.msra.mxu0 0.0
    %504 = vmatprep.subr.mxu0 0.0
    %505 = vmatpush1.msra.mxu0 0.0
    %506 = vmatprep.subr.mxu0 0.0
    %507 = vmatpush1.msra.mxu0 0.0
    %508 = vmatprep.subr.mxu0 0.0
    %509 = vmatpush1.msra.mxu0 0.0
    %510 = vmatprep.subr.mxu0 0.0
    %511 = vmatpush1.msra.mxu0 0.0
    %512 = vmatprep.subr.mxu0 0.0
    %513 = vmatpush1.msra.mxu0 0.0
    %514 = vmatprep.subr.mxu0 0.0
    %515 = vmatpush1.msra.mxu0 0.0
    %516 = vmatprep.subr.mxu0 0.0
    %517 = vmatpush1.msra.mxu0 0.0
    %518 = vmatprep.subr.mxu0 0.0
    %519 = vmatpush1.msra.mxu0 0.0
    %520 = vmatprep.subr.mxu0 0.0
    %521 = vmatpush1.msra.mxu0 0.0
    %522 = vmatprep.subr.mxu0 0.0
    %523 = vmatpush1.msra.mxu0 0.0
    %524 = vmatprep.mubr.f32.mxu0 0.0
    %525 = vmatmul.mubr.f32.gmra.mrb[0].mxu0 0.0
    %v526 = vpop.f32.mrb[0].mxu0
    %v527 = vadd.f32 0.0, %v526
    %v528 = vpop.f32.mrb[0].mxu0
    %v529 = vadd.f32 0.0, %v528
    %530 = vdwg.mxu0
    %531 = vmatprep.subr.mxu0 %v399
    %532 = vmatpush1.msra.mxu0 %v398
    %533 = vmatprep.subr.mxu0 %v403
    %534 = vmatpush1.msra.mxu0 %v402
    %535 = vmatprep.subr.mxu0 %v407
    %536 = vmatpush1.msra.mxu0 %v406
    %537 = vmatprep.subr.mxu0 %v411
    %538 = vmatpush1.msra.mxu0 %v410
    %539 = vmatprep.subr.mxu0 %v415
    %540 = vmatpush1.msra.mxu0 %v414
    %541 = vmatprep.subr.mxu0 %v419
    %542 = vmatpush1.msra.mxu0 %v418
    %543 = vmatprep.subr.mxu0 %v423
    %544 = vmatpush1.msra.mxu0 %v422
    %545 = vmatprep.subr.mxu0 %v427
    %546 = vmatpush1.msra.mxu0 %v426
    %547 = vmatprep.subr.mxu0 %v431
    %548 = vmatpush1.msra.mxu0 %v430
    %549 = vmatprep.subr.mxu0 %v435
    %550 = vmatpush1.msra.mxu0 %v434
    %551 = vmatprep.subr.mxu0 %v439
    %552 = vmatpush1.msra.mxu0 %v438
    %553 = vmatprep.subr.mxu0 %v443
    %554 = vmatpush1.msra.mxu0 %v442
    %555 = vmatprep.subr.mxu0 %v447
    %556 = vmatpush1.msra.mxu0 %v446
    %557 = vmatprep.subr.mxu0 %v451
    %558 = vmatpush1.msra.mxu0 %v450
    %559 = vmatprep.subr.mxu0 %v455
    %560 = vmatpush1.msra.mxu0 %v454
    %561 = vmatprep.subr.mxu0 %v459
    %562 = vmatpush1.msra.mxu0 %v458
    %563 = vmatprep.subr.mxu0 0.0
    %564 = vmatpush1.msra.mxu0 0.0
    %565 = vmatprep.subr.mxu0 0.0
    %566 = vmatpush1.msra.mxu0 0.0
    %567 = vmatprep.subr.mxu0 0.0
    %568 = vmatpush1.msra.mxu0 0.0
    %569 = vmatprep.subr.mxu0 0.0
    %570 = vmatpush1.msra.mxu0 0.0
    %571 = vmatprep.subr.mxu0 0.0
    %572 = vmatpush1.msra.mxu0 0.0
    %573 = vmatprep.subr.mxu0 0.0
    %574 = vmatpush1.msra.mxu0 0.0
    %575 = vmatprep.subr.mxu0 0.0
    %576 = vmatpush1.msra.mxu0 0.0
    %577 = vmatprep.subr.mxu0 0.0
    %578 = vmatpush1.msra.mxu0 0.0
    %579 = vmatprep.subr.mxu0 0.0
    %580 = vmatpush1.msra.mxu0 0.0
    %581 = vmatprep.subr.mxu0 0.0
    %582 = vmatpush1.msra.mxu0 0.0
    %583 = vmatprep.subr.mxu0 0.0
    %584 = vmatpush1.msra.mxu0 0.0
    %585 = vmatprep.subr.mxu0 0.0
    %586 = vmatpush1.msra.mxu0 0.0
    %587 = vmatprep.subr.mxu0 0.0
    %588 = vmatpush1.msra.mxu0 0.0
    %589 = vmatprep.subr.mxu0 0.0
    %590 = vmatpush1.msra.mxu0 0.0
    %591 = vmatprep.subr.mxu0 0.0
    %592 = vmatpush1.msra.mxu0 0.0
    %593 = vmatprep.subr.mxu0 0.0
    %594 = vmatpush1.msra.mxu0 0.0
    %595 = vmatprep.mubr.f32.mxu0 0.0
    %596 = vmatmul.mubr.f32.gmra.mrb[0].mxu0 0.0
    %v597 = vpop.f32.mrb[0].mxu0
    %v598 = vadd.f32 0.0, %v597
    %v599 = vpop.f32.mrb[0].mxu0
    %v600 = vadd.f32 0.0, %v599
    %601 = vdwg.mxu0
    %v602 = vadd.f32 %v392, %v527
    %v603 = vadd.f32 %v393, %v529
    %v604 = vadd.f32 %v394, %v598
    %v605 = vadd.f32 %v395, %v600
    %v606 = vxor.u32 %v602, 2147483648
    %v607 = vmul.f32 %v606, 1.442695
    %v608 = vpow.pop %v607
    %v609 = vadd.f32 %v608, 1.0
    %v610 = vrcp.pop %v609
    %v611 = vmul.f32 1.0, %v610
    %v612 = vxor.u32 %v603, 2147483648
    %v613 = vmul.f32 %v612, 1.442695
    %v614 = vpow.pop %v613
    %v615 = vadd.f32 %v614, 1.0
    %v616 = vrcp.pop %v615
    %v617 = vmul.f32 1.0, %v616
    %v618 = vtanh.pop %v604
    %v619 = vxor.u32 %v605, 2147483648
    %v620 = vmul.f32 %v619, 1.442695
    %v621 = vpow.pop %v620
    %v622 = vadd.f32 %v621, 1.0
    %v623 = vrcp.pop %v622
    %v624 = vmul.f32 1.0, %v623
    %v625 = vmul.f32 %v617, 0.0
    %v626 = vmul.f32 %v611, %v618
    %v627 = vadd.f32 %v625, %v626
    %v628 = vtanh.pop %v627
    %v629 = vmul.f32 %v624, %v628
    %v630 = vld [vmem:[#allocation2 + $0x20] sm:$0xff]
    %v631 = vld [vmem:[#allocation2 + $0x28] sm:$0xff]
    %v632 = vld [vmem:[#allocation2 + $0x30] sm:$0xff]
    %v633 = vld [vmem:[#allocation2 + $0x38] sm:$0xff]
    %634 = vmatprep.subr.mxu0 %v397
    %635 = vmatpush1.msra.mxu0 %v396
    %636 = vmatprep.subr.mxu0 %v401
    %637 = vmatpush1.msra.mxu0 %v400
    %638 = vmatprep.subr.mxu0 %v405
    %639 = vmatpush1.msra.mxu0 %v404
    %640 = vmatprep.subr.mxu0 %v409
    %641 = vmatpush1.msra.mxu0 %v408
    %642 = vmatprep.subr.mxu0 %v413
    %643 = vmatpush1.msra.mxu0 %v412
    %644 = vmatprep.subr.mxu0 %v417
    %645 = vmatpush1.msra.mxu0 %v416
    %646 = vmatprep.subr.mxu0 %v421
    %647 = vmatpush1.msra.mxu0 %v420
    %648 = vmatprep.subr.mxu0 %v425
    %649 = vmatpush1.msra.mxu0 %v424
    %650 = vmatprep.subr.mxu0 %v429
    %651 = vmatpush1.msra.mxu0 %v428
    %652 = vmatprep.subr.mxu0 %v433
    %653 = vmatpush1.msra.mxu0 %v432
    %654 = vmatprep.subr.mxu0 %v437
    %655 = vmatpush1.msra.mxu0 %v436
    %656 = vmatprep.subr.mxu0 %v441
    %657 = vmatpush1.msra.mxu0 %v440
    %658 = vmatprep.subr.mxu0 %v445
    %659 = vmatpush1.msra.mxu0 %v444
    %660 = vmatprep.subr.mxu0 %v449
    %661 = vmatpush1.msra.mxu0 %v448
    %662 = vmatprep.subr.mxu0 %v453
    %663 = vmatpush1.msra.mxu0 %v452
    %664 = vmatprep.subr.mxu0 %v457
    %665 = vmatpush1.msra.mxu0 %v456
    %666 = vmatprep.subr.mxu0 0.0
    %667 = vmatpush1.msra.mxu0 0.0
    %668 = vmatprep.subr.mxu0 0.0
    %669 = vmatpush1.msra.mxu0 0.0
    %670 = vmatprep.subr.mxu0 0.0
    %671 = vmatpush1.msra.mxu0 0.0
    %672 = vmatprep.subr.mxu0 0.0
    %673 = vmatpush1.msra.mxu0 0.0
    %674 = vmatprep.subr.mxu0 0.0
    %675 = vmatpush1.msra.mxu0 0.0
    %676 = vmatprep.subr.mxu0 0.0
    %677 = vmatpush1.msra.mxu0 0.0
    %678 = vmatprep.subr.mxu0 0.0
    %679 = vmatpush1.msra.mxu0 0.0
    %680 = vmatprep.subr.mxu0 0.0
    %681 = vmatpush1.msra.mxu0 0.0
    %682 = vmatprep.subr.mxu0 0.0
    %683 = vmatpush1.msra.mxu0 0.0
    %684 = vmatprep.subr.mxu0 0.0
    %685 = vmatpush1.msra.mxu0 0.0
    %686 = vmatprep.subr.mxu0 0.0
    %687 = vmatpush1.msra.mxu0 0.0
    %688 = vmatprep.subr.mxu0 0.0
    %689 = vmatpush1.msra.mxu0 0.0
    %690 = vmatprep.subr.mxu0 0.0
    %691 = vmatpush1.msra.mxu0 0.0
    %692 = vmatprep.subr.mxu0 0.0
    %693 = vmatpush1.msra.mxu0 0.0
    %694 = vmatprep.subr.mxu0 0.0
    %695 = vmatpush1.msra.mxu0 0.0
    %696 = vmatprep.subr.mxu0 0.0
    %697 = vmatpush1.msra.mxu0 0.0
    %698 = vmatprep.mubr.f32.mxu0 0.0
    %699 = vmatmul.mubr.f32.gmra.mrb[0].mxu0 %v629
    %v700 = vpop.f32.mrb[0].mxu0
    %v701 = vadd.f32 0.0, %v700
    %v702 = vpop.f32.mrb[0].mxu0
    %v703 = vadd.f32 0.0, %v702
    %704 = vdwg.mxu0
    %705 = vmatprep.subr.mxu0 %v399
    %706 = vmatpush1.msra.mxu0 %v398
    %707 = vmatprep.subr.mxu0 %v403
    %708 = vmatpush1.msra.mxu0 %v402
    %709 = vmatprep.subr.mxu0 %v407
    %710 = vmatpush1.msra.mxu0 %v406
    %711 = vmatprep.subr.mxu0 %v411
    %712 = vmatpush1.msra.mxu0 %v410
    %713 = vmatprep.subr.mxu0 %v415
    %714 = vmatpush1.msra.mxu0 %v414
    %715 = vmatprep.subr.mxu0 %v419
    %716 = vmatpush1.msra.mxu0 %v418
    %717 = vmatprep.subr.mxu0 %v423
    %718 = vmatpush1.msra.mxu0 %v422
    %719 = vmatprep.subr.mxu0 %v427
    %720 = vmatpush1.msra.mxu0 %v426
    %721 = vmatprep.subr.mxu0 %v431
    %722 = vmatpush1.msra.mxu0 %v430
    %723 = vmatprep.subr.mxu0 %v435
    %724 = vmatpush1.msra.mxu0 %v434
    %725 = vmatprep.subr.mxu0 %v439
    %726 = vmatpush1.msra.mxu0 %v438
    %727 = vmatprep.subr.mxu0 %v443
    %728 = vmatpush1.msra.mxu0 %v442
    %729 = vmatprep.subr.mxu0 %v447
    %730 = vmatpush1.msra.mxu0 %v446
    %731 = vmatprep.subr.mxu0 %v451
    %732 = vmatpush1.msra.mxu0 %v450
    %733 = vmatprep.subr.mxu0 %v455
    %734 = vmatpush1.msra.mxu0 %v454
    %735 = vmatprep.subr.mxu0 %v459
    %736 = vmatpush1.msra.mxu0 %v458
    %737 = vmatprep.subr.mxu0 0.0
    %738 = vmatpush1.msra.mxu0 0.0
    %739 = vmatprep.subr.mxu0 0.0
    %740 = vmatpush1.msra.mxu0 0.0
    %741 = vmatprep.subr.mxu0 0.0
    %742 = vmatpush1.msra.mxu0 0.0
    %743 = vmatprep.subr.mxu0 0.0
    %744 = vmatpush1.msra.mxu0 0.0
    %745 = vmatprep.subr.mxu0 0.0
    %746 = vmatpush1.msra.mxu0 0.0
    %747 = vmatprep.subr.mxu0 0.0
    %748 = vmatpush1.msra.mxu0 0.0
    %749 = vmatprep.subr.mxu0 0.0
    %750 = vmatpush1.msra.mxu0 0.0
    %751 = vmatprep.subr.mxu0 0.0
    %752 = vmatpush1.msra.mxu0 0.0
    %753 = vmatprep.subr.mxu0 0.0
    %754 = vmatpush1.msra.mxu0 0.0
    %755 = vmatprep.subr.mxu0 0.0
    %756 = vmatpush1.msra.mxu0 0.0
    %757 = vmatprep.subr.mxu0 0.0
    %758 = vmatpush1.msra.mxu0 0.0
    %759 = vmatprep.subr.mxu0 0.0
    %760 = vmatpush1.msra.mxu0 0.0
    %761 = vmatprep.subr.mxu0 0.0
    %762 = vmatpush1.msra.mxu0 0.0
    %763 = vmatprep.subr.mxu0 0.0
    %764 = vmatpush1.msra.mxu0 0.0
    %765 = vmatprep.subr.mxu0 0.0
    %766 = vmatpush1.msra.mxu0 0.0
    %767 = vmatprep.subr.mxu0 0.0
    %768 = vmatpush1.msra.mxu0 0.0
    %769 = vmatprep.mubr.f32.mxu0 0.0
    %770 = vmatmul.mubr.f32.gmra.mrb[0].mxu0 %v629
    %v771 = vpop.f32.mrb[0].mxu0
    %v772 = vadd.f32 0.0, %v771
    %v773 = vpop.f32.mrb[0].mxu0
    %v774 = vadd.f32 0.0, %v773
    %775 = vdwg.mxu0
    %v776 = vadd.f32 %v630, %v701
    %v777 = vadd.f32 %v631, %v703
    %v778 = vadd.f32 %v632, %v772
    %v779 = vadd.f32 %v633, %v774
    %v780 = vxor.u32 %v776, 2147483648
    %v781 = vmul.f32 %v780, 1.442695
    %v782 = vpow.pop %v781
    %v783 = vadd.f32 %v782, 1.0
    %v784 = vrcp.pop %v783
    %v785 = vmul.f32 1.0, %v784
    %v786 = vxor.u32 %v777, 2147483648
    %v787 = vmul.f32 %v786, 1.442695
    %v788 = vpow.pop %v787
    %v789 = vadd.f32 %v788, 1.0
    %v790 = vrcp.pop %v789
    %v791 = vmul.f32 1.0, %v790
    %v792 = vtanh.pop %v778
    %v793 = vxor.u32 %v779, 2147483648
    %v794 = vmul.f32 %v793, 1.442695
    %v795 = vpow.pop %v794
    %v796 = vadd.f32 %v795, 1.0
    %v797 = vrcp.pop %v796
    %v798 = vmul.f32 1.0, %v797
    %v799 = vmul.f32 %v791, %v627
    %v800 = vmul.f32 %v785, %v792
    %v801 = vadd.f32 %v799, %v800
    %v802 = vtanh.pop %v801
    %v803 = vmul.f32 %v798, %v802
    %v804 = vld [vmem:[#allocation2 + $0x40] sm:$0xff]
    %v805 = vld [vmem:[#allocation2 + $0x48] sm:$0xff]
    %v806 = vld [vmem:[#allocation2 + $0x50] sm:$0xff]
    %v807 = vld [vmem:[#allocation2 + $0x58] sm:$0xff]
    %808 = vmatprep.subr.mxu0 %v397
    %809 = vmatpush1.msra.mxu0 %v396
    %810 = vmatprep.subr.mxu0 %v401
    %811 = vmatpush1.msra.mxu0 %v400
    %812 = vmatprep.subr.mxu0 %v405
    %813 = vmatpush1.msra.mxu0 %v404
    %814 = vmatprep.subr.mxu0 %v409
    %815 = vmatpush1.msra.mxu0 %v408
    %816 = vmatprep.subr.mxu0 %v413
    %817 = vmatpush1.msra.mxu0 %v412
    %818 = vmatprep.subr.mxu0 %v417
    %819 = vmatpush1.msra.mxu0 %v416
    %820 = vmatprep.subr.mxu0 %v421
    %821 = vmatpush1.msra.mxu0 %v420
    %822 = vmatprep.subr.mxu0 %v425
    %823 = vmatpush1.msra.mxu0 %v424
    %824 = vmatprep.subr.mxu0 %v429
    %825 = vmatpush1.msra.mxu0 %v428
    %826 = vmatprep.subr.mxu0 %v433
    %827 = vmatpush1.msra.mxu0 %v432
    %828 = vmatprep.subr.mxu0 %v437
    %829 = vmatpush1.msra.mxu0 %v436
    %830 = vmatprep.subr.mxu0 %v441
    %831 = vmatpush1.msra.mxu0 %v440
    %832 = vmatprep.subr.mxu0 %v445
    %833 = vmatpush1.msra.mxu0 %v444
    %834 = vmatprep.subr.mxu0 %v449
    %835 = vmatpush1.msra.mxu0 %v448
    %836 = vmatprep.subr.mxu0 %v453
    %837 = vmatpush1.msra.mxu0 %v452
    %838 = vmatprep.subr.mxu0 %v457
    %839 = vmatpush1.msra.mxu0 %v456
    %840 = vmatprep.subr.mxu0 0.0
    %841 = vmatpush1.msra.mxu0 0.0
    %842 = vmatprep.subr.mxu0 0.0
    %843 = vmatpush1.msra.mxu0 0.0
    %844 = vmatprep.subr.mxu0 0.0
    %845 = vmatpush1.msra.mxu0 0.0
    %846 = vmatprep.subr.mxu0 0.0
    %847 = vmatpush1.msra.mxu0 0.0
    %848 = vmatprep.subr.mxu0 0.0
    %849 = vmatpush1.msra.mxu0 0.0
    %850 = vmatprep.subr.mxu0 0.0
    %851 = vmatpush1.msra.mxu0 0.0
    %852 = vmatprep.subr.mxu0 0.0
    %853 = vmatpush1.msra.mxu0 0.0
    %854 = vmatprep.subr.mxu0 0.0
    %855 = vmatpush1.msra.mxu0 0.0
    %856 = vmatprep.subr.mxu0 0.0
    %857 = vmatpush1.msra.mxu0 0.0
    %858 = vmatprep.subr.mxu0 0.0
    %859 = vmatpush1.msra.mxu0 0.0
    %860 = vmatprep.subr.mxu0 0.0
    %861 = vmatpush1.msra.mxu0 0.0
    %862 = vmatprep.subr.mxu0 0.0
    %863 = vmatpush1.msra.mxu0 0.0
    %864 = vmatprep.subr.mxu0 0.0
    %865 = vmatpush1.msra.mxu0 0.0
    %866 = vmatprep.subr.mxu0 0.0
    %867 = vmatpush1.msra.mxu0 0.0
    %868 = vmatprep.subr.mxu0 0.0
    %869 = vmatpush1.msra.mxu0 0.0
    %870 = vmatprep.subr.mxu0 0.0
    %871 = vmatpush1.msra.mxu0 0.0
    %872 = vmatprep.mubr.f32.mxu0 0.0
    %873 = vmatmul.mubr.f32.gmra.mrb[0].mxu0 %v803
    %v874 = vpop.f32.mrb[0].mxu0
    %v875 = vadd.f32 0.0, %v874
    %v876 = vpop.f32.mrb[0].mxu0
    %v877 = vadd.f32 0.0, %v876
    %878 = vdwg.mxu0
    %879 = vmatprep.subr.mxu0 %v399
    %880 = vmatpush1.msra.mxu0 %v398
    %881 = vmatprep.subr.mxu0 %v403
    %882 = vmatpush1.msra.mxu0 %v402
    %883 = vmatprep.subr.mxu0 %v407
    %884 = vmatpush1.msra.mxu0 %v406
    %885 = vmatprep.subr.mxu0 %v411
    %886 = vmatpush1.msra.mxu0 %v410
    %887 = vmatprep.subr.mxu0 %v415
    %888 = vmatpush1.msra.mxu0 %v414
    %889 = vmatprep.subr.mxu0 %v419
    %890 = vmatpush1.msra.mxu0 %v418
    %891 = vmatprep.subr.mxu0 %v423
    %892 = vmatpush1.msra.mxu0 %v422
    %893 = vmatprep.subr.mxu0 %v427
    %894 = vmatpush1.msra.mxu0 %v426
    %895 = vmatprep.subr.mxu0 %v431
    %896 = vmatpush1.msra.mxu0 %v430
    %897 = vmatprep.subr.mxu0 %v435
    %898 = vmatpush1.msra.mxu0 %v434
    %899 = vmatprep.subr.mxu0 %v439
    %900 = vmatpush1.msra.mxu0 %v438
    %901 = vmatprep.subr.mxu0 %v443
    %902 = vmatpush1.msra.mxu0 %v442
    %903 = vmatprep.subr.mxu0 %v447
    %904 = vmatpush1.msra.mxu0 %v446
    %905 = vmatprep.subr.mxu0 %v451
    %906 = vmatpush1.msra.mxu0 %v450
    %907 = vmatprep.subr.mxu0 %v455
    %908 = vmatpush1.msra.mxu0 %v454
    %909 = vmatprep.subr.mxu0 %v459
    %910 = vmatpush1.msra.mxu0 %v458
    %911 = vmatprep.subr.mxu0 0.0
    %912 = vmatpush1.msra.mxu0 0.0
    %913 = vmatprep.subr.mxu0 0.0
    %914 = vmatpush1.msra.mxu0 0.0
    %915 = vmatprep.subr.mxu0 0.0
    %916 = vmatpush1.msra.mxu0 0.0
    %917 = vmatprep.subr.mxu0 0.0
    %918 = vmatpush1.msra.mxu0 0.0
    %919 = vmatprep.subr.mxu0 0.0
    %920 = vmatpush1.msra.mxu0 0.0
    %921 = vmatprep.subr.mxu0 0.0
    %922 = vmatpush1.msra.mxu0 0.0
    %923 = vmatprep.subr.mxu0 0.0
    %924 = vmatpush1.msra.mxu0 0.0
    %925 = vmatprep.subr.mxu0 0.0
    %926 = vmatpush1.msra.mxu0 0.0
    %927 = vmatprep.subr.mxu0 0.0
    %928 = vmatpush1.msra.mxu0 0.0
    %929 = vmatprep.subr.mxu0 0.0
    %930 = vmatpush1.msra.mxu0 0.0
    %931 = vmatprep.subr.mxu0 0.0
    %932 = vmatpush1.msra.mxu0 0.0
    %933 = vmatprep.subr.mxu0 0.0
    %934 = vmatpush1.msra.mxu0 0.0
    %935 = vmatprep.subr.mxu0 0.0
    %936 = vmatpush1.msra.mxu0 0.0
    %937 = vmatprep.subr.mxu0 0.0
    %938 = vmatpush1.msra.mxu0 0.0
    %939 = vmatprep.subr.mxu0 0.0
    %940 = vmatpush1.msra.mxu0 0.0
    %941 = vmatprep.subr.mxu0 0.0
    %942 = vmatpush1.msra.mxu0 0.0
    %943 = vmatprep.mubr.f32.mxu0 0.0
    %944 = vmatmul.mubr.f32.gmra.mrb[0].mxu0 %v803
    %v945 = vpop.f32.mrb[0].mxu0
    %v946 = vadd.f32 0.0, %v945
    %v947 = vpop.f32.mrb[0].mxu0
    %v948 = vadd.f32 0.0, %v947
    %949 = vdwg.mxu0
    %v950 = vadd.f32 %v804, %v875
    %v951 = vadd.f32 %v805, %v877
    %v952 = vadd.f32 %v806, %v946
    %v953 = vadd.f32 %v807, %v948
    %v954 = vxor.u32 %v950, 2147483648
    %v955 = vmul.f32 %v954, 1.442695
    %v956 = vpow.pop %v955
    %v957 = vadd.f32 %v956, 1.0
    %v958 = vrcp.pop %v957
    %v959 = vmul.f32 1.0, %v958
    %v960 = vxor.u32 %v951, 2147483648
    %v961 = vmul.f32 %v960, 1.442695
    %v962 = vpow.pop %v961
    %v963 = vadd.f32 %v962, 1.0
    %v964 = vrcp.pop %v963
    %v965 = vmul.f32 1.0, %v964
    %v966 = vtanh.pop %v952
    %v967 = vxor.u32 %v953, 2147483648
    %v968 = vmul.f32 %v967, 1.442695
    %v969 = vpow.pop %v968
    %v970 = vadd.f32 %v969, 1.0
    %v971 = vrcp.pop %v970
    %v972 = vmul.f32 1.0, %v971
    %v973 = vmul.f32 %v965, %v801
    %v974 = vmul.f32 %v959, %v966
    %v975 = vadd.f32 %v973, %v974
    %v976 = vtanh.pop %v975
    %v977 = vmul.f32 %v972, %v976
    %v978 = vld [vmem:[#allocation2 + $0x60] sm:$0xff]
    %v979 = vld [vmem:[#allocation2 + $0x68] sm:$0xff]
    %v980 = vld [vmem:[#allocation2 + $0x70] sm:$0xff]
    %v981 = vld [vmem:[#allocation2 + $0x78] sm:$0xff]
    %982 = vmatprep.subr.mxu0 %v397
    %983 = vmatpush1.msra.mxu0 %v396
    %984 = vmatprep.subr.mxu0 %v401
    %985 = vmatpush1.msra.mxu0 %v400
    %986 = vmatprep.subr.mxu0 %v405
    %987 = vmatpush1.msra.mxu0 %v404
    %988 = vmatprep.subr.mxu0 %v409
    %989 = vmatpush1.msra.mxu0 %v408
    %990 = vmatprep.subr.mxu0 %v413
    %991 = vmatpush1.msra.mxu0 %v412
    %992 = vmatprep.subr.mxu0 %v417
    %993 = vmatpush1.msra.mxu0 %v416
    %994 = vmatprep.subr.mxu0 %v421
    %995 = vmatpush1.msra.mxu0 %v420
    %996 = vmatprep.subr.mxu0 %v425
    %997 = vmatpush1.msra.mxu0 %v424
    %998 = vmatprep.subr.mxu0 %v429
    %999 = vmatpush1.msra.mxu0 %v428
    %1000 = vmatprep.subr.mxu0 %v433
    %1001 = vmatpush1.msra.mxu0 %v432
    %1002 = vmatprep.subr.mxu0 %v437
    %1003 = vmatpush1.msra.mxu0 %v436
    %1004 = vmatprep.subr.mxu0 %v441
    %1005 = vmatpush1.msra.mxu0 %v440
    %1006 = vmatprep.subr.mxu0 %v445
    %1007 = vmatpush1.msra.mxu0 %v444
    %1008 = vmatprep.subr.mxu0 %v449
    %1009 = vmatpush1.msra.mxu0 %v448
    %1010 = vmatprep.subr.mxu0 %v453
    %1011 = vmatpush1.msra.mxu0 %v452
    %1012 = vmatprep.subr.mxu0 %v457
    %1013 = vmatpush1.msra.mxu0 %v456
    %1014 = vmatprep.subr.mxu0 0.0
    %1015 = vmatpush1.msra.mxu0 0.0
    %1016 = vmatprep.subr.mxu0 0.0
    %1017 = vmatpush1.msra.mxu0 0.0
    %1018 = vmatprep.subr.mxu0 0.0
    %1019 = vmatpush1.msra.mxu0 0.0
    %1020 = vmatprep.subr.mxu0 0.0
    %1021 = vmatpush1.msra.mxu0 0.0
    %1022 = vmatprep.subr.mxu0 0.0
    %1023 = vmatpush1.msra.mxu0 0.0
    %1024 = vmatprep.subr.mxu0 0.0
    %1025 = vmatpush1.msra.mxu0 0.0
    %1026 = vmatprep.subr.mxu0 0.0
    %1027 = vmatpush1.msra.mxu0 0.0
    %1028 = vmatprep.subr.mxu0 0.0
    %1029 = vmatpush1.msra.mxu0 0.0
    %1030 = vmatprep.subr.mxu0 0.0
    %1031 = vmatpush1.msra.mxu0 0.0
    %1032 = vmatprep.subr.mxu0 0.0
    %1033 = vmatpush1.msra.mxu0 0.0
    %1034 = vmatprep.subr.mxu0 0.0
    %1035 = vmatpush1.msra.mxu0 0.0
    %1036 = vmatprep.subr.mxu0 0.0
    %1037 = vmatpush1.msra.mxu0 0.0
    %1038 = vmatprep.subr.mxu0 0.0
    %1039 = vmatpush1.msra.mxu0 0.0
    %1040 = vmatprep.subr.mxu0 0.0
    %1041 = vmatpush1.msra.mxu0 0.0
    %1042 = vmatprep.subr.mxu0 0.0
    %1043 = vmatpush1.msra.mxu0 0.0
    %1044 = vmatprep.subr.mxu0 0.0
    %1045 = vmatpush1.msra.mxu0 0.0
    %1046 = vmatprep.mubr.f32.mxu0 0.0
    %1047 = vmatmul.mubr.f32.gmra.mrb[0].mxu0 %v977
    %v1048 = vpop.f32.mrb[0].mxu0
    %v1049 = vadd.f32 0.0, %v1048
    %v1050 = vpop.f32.mrb[0].mxu0
    %v1051 = vadd.f32 0.0, %v1050
    %1052 = vdwg.mxu0
    %1053 = vmatprep.subr.mxu0 %v399
    %1054 = vmatpush1.msra.mxu0 %v398
    %1055 = vmatprep.subr.mxu0 %v403
    %1056 = vmatpush1.msra.mxu0 %v402
    %1057 = vmatprep.subr.mxu0 %v407
    %1058 = vmatpush1.msra.mxu0 %v406
    %1059 = vmatprep.subr.mxu0 %v411
    %1060 = vmatpush1.msra.mxu0 %v410
    %1061 = vmatprep.subr.mxu0 %v415
    %1062 = vmatpush1.msra.mxu0 %v414
    %1063 = vmatprep.subr.mxu0 %v419
    %1064 = vmatpush1.msra.mxu0 %v418
    %1065 = vmatprep.subr.mxu0 %v423
    %1066 = vmatpush1.msra.mxu0 %v422
    %1067 = vmatprep.subr.mxu0 %v427
    %1068 = vmatpush1.msra.mxu0 %v426
    %1069 = vmatprep.subr.mxu0 %v431
    %1070 = vmatpush1.msra.mxu0 %v430
    %1071 = vmatprep.subr.mxu0 %v435
    %1072 = vmatpush1.msra.mxu0 %v434
    %1073 = vmatprep.subr.mxu0 %v439
    %1074 = vmatpush1.msra.mxu0 %v438
    %1075 = vmatprep.subr.mxu0 %v443
    %1076 = vmatpush1.msra.mxu0 %v442
    %1077 = vmatprep.subr.mxu0 %v447
    %1078 = vmatpush1.msra.mxu0 %v446
    %1079 = vmatprep.subr.mxu0 %v451
    %1080 = vmatpush1.msra.mxu0 %v450
    %1081 = vmatprep.subr.mxu0 %v455
    %1082 = vmatpush1.msra.mxu0 %v454
    %1083 = vmatprep.subr.mxu0 %v459
    %1084 = vmatpush1.msra.mxu0 %v458
    %1085 = vmatprep.subr.mxu0 0.0
    %1086 = vmatpush1.msra.mxu0 0.0
    %1087 = vmatprep.subr.mxu0 0.0
    %1088 = vmatpush1.msra.mxu0 0.0
    %1089 = vmatprep.subr.mxu0 0.0
    %1090 = vmatpush1.msra.mxu0 0.0
    %1091 = vmatprep.subr.mxu0 0.0
    %1092 = vmatpush1.msra.mxu0 0.0
    %1093 = vmatprep.subr.mxu0 0.0
    %1094 = vmatpush1.msra.mxu0 0.0
    %1095 = vmatprep.subr.mxu0 0.0
    %1096 = vmatpush1.msra.mxu0 0.0
    %1097 = vmatprep.subr.mxu0 0.0
    %1098 = vmatpush1.msra.mxu0 0.0
    %1099 = vmatprep.subr.mxu0 0.0
    %1100 = vmatpush1.msra.mxu0 0.0
    %1101 = vmatprep.subr.mxu0 0.0
    %1102 = vmatpush1.msra.mxu0 0.0
    %1103 = vmatprep.subr.mxu0 0.0
    %1104 = vmatpush1.msra.mxu0 0.0
    %1105 = vmatprep.subr.mxu0 0.0
    %1106 = vmatpush1.msra.mxu0 0.0
    %1107 = vmatprep.subr.mxu0 0.0
    %1108 = vmatpush1.msra.mxu0 0.0
    %1109 = vmatprep.subr.mxu0 0.0
    %1110 = vmatpush1.msra.mxu0 0.0
    %1111 = vmatprep.subr.mxu0 0.0
    %1112 = vmatpush1.msra.mxu0 0.0
    %1113 = vmatprep.subr.mxu0 0.0
    %1114 = vmatpush1.msra.mxu0 0.0
    %1115 = vmatprep.subr.mxu0 0.0
    %1116 = vmatpush1.msra.mxu0 0.0
    %1117 = vmatprep.mubr.f32.mxu0 0.0
    %1118 = vmatmul.mubr.f32.gmra.mrb[0].mxu0 %v977
    %v1119 = vpop.f32.mrb[0].mxu0
    %v1120 = vadd.f32 0.0, %v1119
    %v1121 = vpop.f32.mrb[0].mxu0
    %v1122 = vadd.f32 0.0, %v1121
    %1123 = vdwg.mxu0
    %v1124 = vadd.f32 %v978, %v1049
    %v1125 = vadd.f32 %v979, %v1051
    %v1126 = vadd.f32 %v980, %v1120
    %v1127 = vadd.f32 %v981, %v1122
    %v1128 = vxor.u32 %v1124, 2147483648
    %v1129 = vmul.f32 %v1128, 1.442695
    %v1130 = vpow.pop %v1129
    %v1131 = vadd.f32 %v1130, 1.0
    %v1132 = vrcp.pop %v1131
    %v1133 = vmul.f32 1.0, %v1132
    %v1134 = vxor.u32 %v1125, 2147483648
    %v1135 = vmul.f32 %v1134, 1.442695
    %v1136 = vpow.pop %v1135
    %v1137 = vadd.f32 %v1136, 1.0
    %v1138 = vrcp.pop %v1137
    %v1139 = vmul.f32 1.0, %v1138
    %v1140 = vtanh.pop %v1126
    %v1141 = vxor.u32 %v1127, 2147483648
    %v1142 = vmul.f32 %v1141, 1.442695
    %v1143 = vpow.pop %v1142
    %v1144 = vadd.f32 %v1143, 1.0
    %v1145 = vrcp.pop %v1144
    %v1146 = vmul.f32 1.0, %v1145
    %v1147 = vmul.f32 %v1139, %v975
    %v1148 = vmul.f32 %v1133, %v1140
    %v1149 = vadd.f32 %v1147, %v1148
    %v1150 = vtanh.pop %v1149
    %v1151 = vmul.f32 %v1146, %v1150
    %v1152 = vld [vmem:[#allocation2 + $0x80] sm:$0xff]
    %v1153 = vld [vmem:[#allocation2 + $0x88] sm:$0xff]
    %v1154 = vld [vmem:[#allocation2 + $0x90] sm:$0xff]
    %v1155 = vld [vmem:[#allocation2 + $0x98] sm:$0xff]
    %1156 = vmatprep.subr.mxu0 %v397
    %1157 = vmatpush1.msra.mxu0 %v396
    %1158 = vmatprep.subr.mxu0 %v401
    %1159 = vmatpush1.msra.mxu0 %v400
    %1160 = vmatprep.subr.mxu0 %v405
    %1161 = vmatpush1.msra.mxu0 %v404
    %1162 = vmatprep.subr.mxu0 %v409
    %1163 = vmatpush1.msra.mxu0 %v408
    %1164 = vmatprep.subr.mxu0 %v413
    %1165 = vmatpush1.msra.mxu0 %v412
    %1166 = vmatprep.subr.mxu0 %v417
    %1167 = vmatpush1.msra.mxu0 %v416
    %1168 = vmatprep.subr.mxu0 %v421
    %1169 = vmatpush1.msra.mxu0 %v420
    %1170 = vmatprep.subr.mxu0 %v425
    %1171 = vmatpush1.msra.mxu0 %v424
    %1172 = vmatprep.subr.mxu0 %v429
    %1173 = vmatpush1.msra.mxu0 %v428
    %1174 = vmatprep.subr.mxu0 %v433
    %1175 = vmatpush1.msra.mxu0 %v432
    %1176 = vmatprep.subr.mxu0 %v437
    %1177 = vmatpush1.msra.mxu0 %v436
    %1178 = vmatprep.subr.mxu0 %v441
    %1179 = vmatpush1.msra.mxu0 %v440
    %1180 = vmatprep.subr.mxu0 %v445
    %1181 = vmatpush1.msra.mxu0 %v444
    %1182 = vmatprep.subr.mxu0 %v449
    %1183 = vmatpush1.msra.mxu0 %v448
    %1184 = vmatprep.subr.mxu0 %v453
    %1185 = vmatpush1.msra.mxu0 %v452
    %1186 = vmatprep.subr.mxu0 %v457
    %1187 = vmatpush1.msra.mxu0 %v456
    %1188 = vmatprep.subr.mxu0 0.0
    %1189 = vmatpush1.msra.mxu0 0.0
    %1190 = vmatprep.subr.mxu0 0.0
    %1191 = vmatpush1.msra.mxu0 0.0
    %1192 = vmatprep.subr.mxu0 0.0
    %1193 = vmatpush1.msra.mxu0 0.0
    %1194 = vmatprep.subr.mxu0 0.0
    %1195 = vmatpush1.msra.mxu0 0.0
    %1196 = vmatprep.subr.mxu0 0.0
    %1197 = vmatpush1.msra.mxu0 0.0
    %1198 = vmatprep.subr.mxu0 0.0
    %1199 = vmatpush1.msra.mxu0 0.0
    %1200 = vmatprep.subr.mxu0 0.0
    %1201 = vmatpush1.msra.mxu0 0.0
    %1202 = vmatprep.subr.mxu0 0.0
    %1203 = vmatpush1.msra.mxu0 0.0
    %1204 = vmatprep.subr.mxu0 0.0
    %1205 = vmatpush1.msra.mxu0 0.0
    %1206 = vmatprep.subr.mxu0 0.0
    %1207 = vmatpush1.msra.mxu0 0.0
    %1208 = vmatprep.subr.mxu0 0.0
    %1209 = vmatpush1.msra.mxu0 0.0
    %1210 = vmatprep.subr.mxu0 0.0
    %1211 = vmatpush1.msra.mxu0 0.0
    %1212 = vmatprep.subr.mxu0 0.0
    %1213 = vmatpush1.msra.mxu0 0.0
    %1214 = vmatprep.subr.mxu0 0.0
    %1215 = vmatpush1.msra.mxu0 0.0
    %1216 = vmatprep.subr.mxu0 0.0
    %1217 = vmatpush1.msra.mxu0 0.0
    %1218 = vmatprep.subr.mxu0 0.0
    %1219 = vmatpush1.msra.mxu0 0.0
    %1220 = vmatprep.mubr.f32.mxu0 0.0
    %1221 = vmatmul.mubr.f32.gmra.mrb[0].mxu0 %v1151
    %v1222 = vpop.f32.mrb[0].mxu0
    %v1223 = vadd.f32 0.0, %v1222
    %v1224 = vpop.f32.mrb[0].mxu0
    %v1225 = vadd.f32 0.0, %v1224
    %1226 = vdwg.mxu0
    %1227 = vmatprep.subr.mxu0 %v399
    %1228 = vmatpush1.msra.mxu0 %v398
    %1229 = vmatprep.subr.mxu0 %v403
    %1230 = vmatpush1.msra.mxu0 %v402
    %1231 = vmatprep.subr.mxu0 %v407
    %1232 = vmatpush1.msra.mxu0 %v406
    %1233 = vmatprep.subr.mxu0 %v411
    %1234 = vmatpush1.msra.mxu0 %v410
    %1235 = vmatprep.subr.mxu0 %v415
    %1236 = vmatpush1.msra.mxu0 %v414
    %1237 = vmatprep.subr.mxu0 %v419
    %1238 = vmatpush1.msra.mxu0 %v418
    %1239 = vmatprep.subr.mxu0 %v423
    %1240 = vmatpush1.msra.mxu0 %v422
    %1241 = vmatprep.subr.mxu0 %v427
    %1242 = vmatpush1.msra.mxu0 %v426
    %1243 = vmatprep.subr.mxu0 %v431
    %1244 = vmatpush1.msra.mxu0 %v430
    %1245 = vmatprep.subr.mxu0 %v435
    %1246 = vmatpush1.msra.mxu0 %v434
    %1247 = vmatprep.subr.mxu0 %v439
    %1248 = vmatpush1.msra.mxu0 %v438
    %1249 = vmatprep.subr.mxu0 %v443
    %1250 = vmatpush1.msra.mxu0 %v442
    %1251 = vmatprep.subr.mxu0 %v447
    %1252 = vmatpush1.msra.mxu0 %v446
    %1253 = vmatprep.subr.mxu0 %v451
    %1254 = vmatpush1.msra.mxu0 %v450
    %1255 = vmatprep.subr.mxu0 %v455
    %1256 = vmatpush1.msra.mxu0 %v454
    %1257 = vmatprep.subr.mxu0 %v459
    %1258 = vmatpush1.msra.mxu0 %v458
    %1259 = vmatprep.subr.mxu0 0.0
    %1260 = vmatpush1.msra.mxu0 0.0
    %1261 = vmatprep.subr.mxu0 0.0
    %1262 = vmatpush1.msra.mxu0 0.0
    %1263 = vmatprep.subr.mxu0 0.0
    %1264 = vmatpush1.msra.mxu0 0.0
    %1265 = vmatprep.subr.mxu0 0.0
    %1266 = vmatpush1.msra.mxu0 0.0
    %1267 = vmatprep.subr.mxu0 0.0
    %1268 = vmatpush1.msra.mxu0 0.0
    %1269 = vmatprep.subr.mxu0 0.0
    %1270 = vmatpush1.msra.mxu0 0.0
    %1271 = vmatprep.subr.mxu0 0.0
    %1272 = vmatpush1.msra.mxu0 0.0
    %1273 = vmatprep.subr.mxu0 0.0
    %1274 = vmatpush1.msra.mxu0 0.0
    %1275 = vmatprep.subr.mxu0 0.0
    %1276 = vmatpush1.msra.mxu0 0.0
    %1277 = vmatprep.subr.mxu0 0.0
    %1278 = vmatpush1.msra.mxu0 0.0
    %1279 = vmatprep.subr.mxu0 0.0
    %1280 = vmatpush1.msra.mxu0 0.0
    %1281 = vmatprep.subr.mxu0 0.0
    %1282 = vmatpush1.msra.mxu0 0.0
    %1283 = vmatprep.subr.mxu0 0.0
    %1284 = vmatpush1.msra.mxu0 0.0
    %1285 = vmatprep.subr.mxu0 0.0
    %1286 = vmatpush1.msra.mxu0 0.0
    %1287 = vmatprep.subr.mxu0 0.0
    %1288 = vmatpush1.msra.mxu0 0.0
    %1289 = vmatprep.subr.mxu0 0.0
    %1290 = vmatpush1.msra.mxu0 0.0
    %1291 = vmatprep.mubr.f32.mxu0 0.0
    %1292 = vmatmul.mubr.f32.gmra.mrb[0].mxu0 %v1151
    %v1293 = vpop.f32.mrb[0].mxu0
    %v1294 = vadd.f32 0.0, %v1293
    %v1295 = vpop.f32.mrb[0].mxu0
    %v1296 = vadd.f32 0.0, %v1295
    %1297 = vdwg.mxu0
    %v1298 = vadd.f32 %v1152, %v1223
    %v1299 = vadd.f32 %v1153, %v1225
    %v1300 = vadd.f32 %v1154, %v1294
    %v1301 = vadd.f32 %v1155, %v1296
    %v1302 = vxor.u32 %v1298, 2147483648
    %v1303 = vmul.f32 %v1302, 1.442695
    %v1304 = vpow.pop %v1303
    %v1305 = vadd.f32 %v1304, 1.0
    %v1306 = vrcp.pop %v1305
    %v1307 = vmul.f32 1.0, %v1306
    %v1308 = vxor.u32 %v1299, 2147483648
    %v1309 = vmul.f32 %v1308, 1.442695
    %v1310 = vpow.pop %v1309
    %v1311 = vadd.f32 %v1310, 1.0
    %v1312 = vrcp.pop %v1311
    %v1313 = vmul.f32 1.0, %v1312
    %v1314 = vtanh.pop %v1300
    %v1315 = vxor.u32 %v1301, 2147483648
    %v1316 = vmul.f32 %v1315, 1.442695
    %v1317 = vpow.pop %v1316
    %v1318 = vadd.f32 %v1317, 1.0
    %v1319 = vrcp.pop %v1318
    %v1320 = vmul.f32 1.0, %v1319
    %v1321 = vmul.f32 %v1313, %v1149
    %v1322 = vmul.f32 %v1307, %v1314
    %v1323 = vadd.f32 %v1321, %v1322
    %v1324 = vtanh.pop %v1323
    %v1325 = vmul.f32 %v1320, %v1324
    %v1326 = vld [vmem:[#allocation2 + $0xa0] sm:$0xff]
    %v1327 = vld [vmem:[#allocation2 + $0xa8] sm:$0xff]
    %v1328 = vld [vmem:[#allocation2 + $0xb0] sm:$0xff]
    %v1329 = vld [vmem:[#allocation2 + $0xb8] sm:$0xff]
    %1330 = vmatprep.subr.mxu0 %v397
    %1331 = vmatpush1.msra.mxu0 %v396
    %1332 = vmatprep.subr.mxu0 %v401
    %1333 = vmatpush1.msra.mxu0 %v400
    %1334 = vmatprep.subr.mxu0 %v405
    %1335 = vmatpush1.msra.mxu0 %v404
    %1336 = vmatprep.subr.mxu0 %v409
    %1337 = vmatpush1.msra.mxu0 %v408
    %1338 = vmatprep.subr.mxu0 %v413
    %1339 = vmatpush1.msra.mxu0 %v412
    %1340 = vmatprep.subr.mxu0 %v417
    %1341 = vmatpush1.msra.mxu0 %v416
    %1342 = vmatprep.subr.mxu0 %v421
    %1343 = vmatpush1.msra.mxu0 %v420
    %1344 = vmatprep.subr.mxu0 %v425
    %1345 = vmatpush1.msra.mxu0 %v424
    %1346 = vmatprep.subr.mxu0 %v429
    %1347 = vmatpush1.msra.mxu0 %v428
    %1348 = vmatprep.subr.mxu0 %v433
    %1349 = vmatpush1.msra.mxu0 %v432
    %1350 = vmatprep.subr.mxu0 %v437
    %1351 = vmatpush1.msra.mxu0 %v436
    %1352 = vmatprep.subr.mxu0 %v441
    %1353 = vmatpush1.msra.mxu0 %v440
    %1354 = vmatprep.subr.mxu0 %v445
    %1355 = vmatpush1.msra.mxu0 %v444
    %1356 = vmatprep.subr.mxu0 %v449
    %1357 = vmatpush1.msra.mxu0 %v448
    %1358 = vmatprep.subr.mxu0 %v453
    %1359 = vmatpush1.msra.mxu0 %v452
    %1360 = vmatprep.subr.mxu0 %v457
    %1361 = vmatpush1.msra.mxu0 %v456
    %1362 = vmatprep.subr.mxu0 0.0
    %1363 = vmatpush1.msra.mxu0 0.0
    %1364 = vmatprep.subr.mxu0 0.0
    %1365 = vmatpush1.msra.mxu0 0.0
    %1366 = vmatprep.subr.mxu0 0.0
    %1367 = vmatpush1.msra.mxu0 0.0
    %1368 = vmatprep.subr.mxu0 0.0
    %1369 = vmatpush1.msra.mxu0 0.0
    %1370 = vmatprep.subr.mxu0 0.0
    %1371 = vmatpush1.msra.mxu0 0.0
    %1372 = vmatprep.subr.mxu0 0.0
    %1373 = vmatpush1.msra.mxu0 0.0
    %1374 = vmatprep.subr.mxu0 0.0
    %1375 = vmatpush1.msra.mxu0 0.0
    %1376 = vmatprep.subr.mxu0 0.0
    %1377 = vmatpush1.msra.mxu0 0.0
    %1378 = vmatprep.subr.mxu0 0.0
    %1379 = vmatpush1.msra.mxu0 0.0
    %1380 = vmatprep.subr.mxu0 0.0
    %1381 = vmatpush1.msra.mxu0 0.0
    %1382 = vmatprep.subr.mxu0 0.0
    %1383 = vmatpush1.msra.mxu0 0.0
    %1384 = vmatprep.subr.mxu0 0.0
    %1385 = vmatpush1.msra.mxu0 0.0
    %1386 = vmatprep.subr.mxu0 0.0
    %1387 = vmatpush1.msra.mxu0 0.0
    %1388 = vmatprep.subr.mxu0 0.0
    %1389 = vmatpush1.msra.mxu0 0.0
    %1390 = vmatprep.subr.mxu0 0.0
    %1391 = vmatpush1.msra.mxu0 0.0
    %1392 = vmatprep.subr.mxu0 0.0
    %1393 = vmatpush1.msra.mxu0 0.0
    %1394 = vmatprep.mubr.f32.mxu0 0.0
    %1395 = vmatmul.mubr.f32.gmra.mrb[0].mxu0 %v1325
    %v1396 = vpop.f32.mrb[0].mxu0
    %v1397 = vadd.f32 0.0, %v1396
    %v1398 = vpop.f32.mrb[0].mxu0
    %v1399 = vadd.f32 0.0, %v1398
    %1400 = vdwg.mxu0
    %1401 = vmatprep.subr.mxu0 %v399
    %1402 = vmatpush1.msra.mxu0 %v398
    %1403 = vmatprep.subr.mxu0 %v403
    %1404 = vmatpush1.msra.mxu0 %v402
    %1405 = vmatprep.subr.mxu0 %v407
    %1406 = vmatpush1.msra.mxu0 %v406
    %1407 = vmatprep.subr.mxu0 %v411
    %1408 = vmatpush1.msra.mxu0 %v410
    %1409 = vmatprep.subr.mxu0 %v415
    %1410 = vmatpush1.msra.mxu0 %v414
    %1411 = vmatprep.subr.mxu0 %v419
    %1412 = vmatpush1.msra.mxu0 %v418
    %1413 = vmatprep.subr.mxu0 %v423
    %1414 = vmatpush1.msra.mxu0 %v422
    %1415 = vmatprep.subr.mxu0 %v427
    %1416 = vmatpush1.msra.mxu0 %v426
    %1417 = vmatprep.subr.mxu0 %v431
    %1418 = vmatpush1.msra.mxu0 %v430
    %1419 = vmatprep.subr.mxu0 %v435
    %1420 = vmatpush1.msra.mxu0 %v434
    %1421 = vmatprep.subr.mxu0 %v439
    %1422 = vmatpush1.msra.mxu0 %v438
    %1423 = vmatprep.subr.mxu0 %v443
    %1424 = vmatpush1.msra.mxu0 %v442
    %1425 = vmatprep.subr.mxu0 %v447
    %1426 = vmatpush1.msra.mxu0 %v446
    %1427 = vmatprep.subr.mxu0 %v451
    %1428 = vmatpush1.msra.mxu0 %v450
    %1429 = vmatprep.subr.mxu0 %v455
    %1430 = vmatpush1.msra.mxu0 %v454
    %1431 = vmatprep.subr.mxu0 %v459
    %1432 = vmatpush1.msra.mxu0 %v458
    %1433 = vmatprep.subr.mxu0 0.0
    %1434 = vmatpush1.msra.mxu0 0.0
    %1435 = vmatprep.subr.mxu0 0.0
    %1436 = vmatpush1.msra.mxu0 0.0
    %1437 = vmatprep.subr.mxu0 0.0
    %1438 = vmatpush1.msra.mxu0 0.0
    %1439 = vmatprep.subr.mxu0 0.0
    %1440 = vmatpush1.msra.mxu0 0.0
    %1441 = vmatprep.subr.mxu0 0.0
    %1442 = vmatpush1.msra.mxu0 0.0
    %1443 = vmatprep.subr.mxu0 0.0
    %1444 = vmatpush1.msra.mxu0 0.0
    %1445 = vmatprep.subr.mxu0 0.0
    %1446 = vmatpush1.msra.mxu0 0.0
    %1447 = vmatprep.subr.mxu0 0.0
    %1448 = vmatpush1.msra.mxu0 0.0
    %1449 = vmatprep.subr.mxu0 0.0
    %1450 = vmatpush1.msra.mxu0 0.0
    %1451 = vmatprep.subr.mxu0 0.0
    %1452 = vmatpush1.msra.mxu0 0.0
    %1453 = vmatprep.subr.mxu0 0.0
    %1454 = vmatpush1.msra.mxu0 0.0
    %1455 = vmatprep.subr.mxu0 0.0
    %1456 = vmatpush1.msra.mxu0 0.0
    %1457 = vmatprep.subr.mxu0 0.0
    %1458 = vmatpush1.msra.mxu0 0.0
    %1459 = vmatprep.subr.mxu0 0.0
    %1460 = vmatpush1.msra.mxu0 0.0
    %1461 = vmatprep.subr.mxu0 0.0
    %1462 = vmatpush1.msra.mxu0 0.0
    %1463 = vmatprep.subr.mxu0 0.0
    %1464 = vmatpush1.msra.mxu0 0.0
    %1465 = vmatprep.mubr.f32.mxu0 0.0
    %1466 = vmatmul.mubr.f32.gmra.mrb[0].mxu0 %v1325
    %v1467 = vpop.f32.mrb[0].mxu0
    %v1468 = vadd.f32 0.0, %v1467
    %v1469 = vpop.f32.mrb[0].mxu0
    %v1470 = vadd.f32 0.0, %v1469
    %1471 = vdwg.mxu0
    %v1472 = vadd.f32 %v1326, %v1397
    %v1473 = vadd.f32 %v1327, %v1399
    %v1474 = vadd.f32 %v1328, %v1468
    %v1475 = vadd.f32 %v1329, %v1470
    %v1476 = vxor.u32 %v1472, 2147483648
    %v1477 = vmul.f32 %v1476, 1.442695
    %v1478 = vpow.pop %v1477
    %v1479 = vadd.f32 %v1478, 1.0
    %v1480 = vrcp.pop %v1479
    %v1481 = vmul.f32 1.0, %v1480
    %v1482 = vxor.u32 %v1473, 2147483648
    %v1483 = vmul.f32 %v1482, 1.442695
    %v1484 = vpow.pop %v1483
    %v1485 = vadd.f32 %v1484, 1.0
    %v1486 = vrcp.pop %v1485
    %v1487 = vmul.f32 1.0, %v1486
    %v1488 = vtanh.pop %v1474
    %v1489 = vxor.u32 %v1475, 2147483648
    %v1490 = vmul.f32 %v1489, 1.442695
    %v1491 = vpow.pop %v1490
    %v1492 = vadd.f32 %v1491, 1.0
    %v1493 = vrcp.pop %v1492
    %v1494 = vmul.f32 1.0, %v1493
    %v1495 = vmul.f32 %v1487, %v1323
    %v1496 = vmul.f32 %v1481, %v1488
    %v1497 = vadd.f32 %v1495, %v1496
    %v1498 = vtanh.pop %v1497
    %v1499 = vmul.f32 %v1494, %v1498
    %v1500 = vld [vmem:[#allocation2 + $0xc0] sm:$0xff]
    %v1501 = vld [vmem:[#allocation2 + $0xc8] sm:$0xff]
    %v1502 = vld [vmem:[#allocation2 + $0xd0] sm:$0xff]
    %v1503 = vld [vmem:[#allocation2 + $0xd8] sm:$0xff]
    %1504 = vmatprep.subr.mxu0 %v397
    %1505 = vmatpush1.msra.mxu0 %v396
    %1506 = vmatprep.subr.mxu0 %v401
    %1507 = vmatpush1.msra.mxu0 %v400
    %1508 = vmatprep.subr.mxu0 %v405
    %1509 = vmatpush1.msra.mxu0 %v404
    %1510 = vmatprep.subr.mxu0 %v409
    %1511 = vmatpush1.msra.mxu0 %v408
    %1512 = vmatprep.subr.mxu0 %v413
    %1513 = vmatpush1.msra.mxu0 %v412
    %1514 = vmatprep.subr.mxu0 %v417
    %1515 = vmatpush1.msra.mxu0 %v416
    %1516 = vmatprep.subr.mxu0 %v421
    %1517 = vmatpush1.msra.mxu0 %v420
    %1518 = vmatprep.subr.mxu0 %v425
    %1519 = vmatpush1.msra.mxu0 %v424
    %1520 = vmatprep.subr.mxu0 %v429
    %1521 = vmatpush1.msra.mxu0 %v428
    %1522 = vmatprep.subr.mxu0 %v433
    %1523 = vmatpush1.msra.mxu0 %v432
    %1524 = vmatprep.subr.mxu0 %v437
    %1525 = vmatpush1.msra.mxu0 %v436
    %1526 = vmatprep.subr.mxu0 %v441
    %1527 = vmatpush1.msra.mxu0 %v440
    %1528 = vmatprep.subr.mxu0 %v445
    %1529 = vmatpush1.msra.mxu0 %v444
    %1530 = vmatprep.subr.mxu0 %v449
    %1531 = vmatpush1.msra.mxu0 %v448
    %1532 = vmatprep.subr.mxu0 %v453
    %1533 = vmatpush1.msra.mxu0 %v452
    %1534 = vmatprep.subr.mxu0 %v457
    %1535 = vmatpush1.msra.mxu0 %v456
    %1536 = vmatprep.subr.mxu0 0.0
    %1537 = vmatpush1.msra.mxu0 0.0
    %1538 = vmatprep.subr.mxu0 0.0
    %1539 = vmatpush1.msra.mxu0 0.0
    %1540 = vmatprep.subr.mxu0 0.0
    %1541 = vmatpush1.msra.mxu0 0.0
    %1542 = vmatprep.subr.mxu0 0.0
    %1543 = vmatpush1.msra.mxu0 0.0
    %1544 = vmatprep.subr.mxu0 0.0
    %1545 = vmatpush1.msra.mxu0 0.0
    %1546 = vmatprep.subr.mxu0 0.0
    %1547 = vmatpush1.msra.mxu0 0.0
    %1548 = vmatprep.subr.mxu0 0.0
    %1549 = vmatpush1.msra.mxu0 0.0
    %1550 = vmatprep.subr.mxu0 0.0
    %1551 = vmatpush1.msra.mxu0 0.0
    %1552 = vmatprep.subr.mxu0 0.0
    %1553 = vmatpush1.msra.mxu0 0.0
    %1554 = vmatprep.subr.mxu0 0.0
    %1555 = vmatpush1.msra.mxu0 0.0
    %1556 = vmatprep.subr.mxu0 0.0
    %1557 = vmatpush1.msra.mxu0 0.0
    %1558 = vmatprep.subr.mxu0 0.0
    %1559 = vmatpush1.msra.mxu0 0.0
    %1560 = vmatprep.subr.mxu0 0.0
    %1561 = vmatpush1.msra.mxu0 0.0
    %1562 = vmatprep.subr.mxu0 0.0
    %1563 = vmatpush1.msra.mxu0 0.0
    %1564 = vmatprep.subr.mxu0 0.0
    %1565 = vmatpush1.msra.mxu0 0.0
    %1566 = vmatprep.subr.mxu0 0.0
    %1567 = vmatpush1.msra.mxu0 0.0
    %1568 = vmatprep.mubr.f32.mxu0 0.0
    %1569 = vmatmul.mubr.f32.gmra.mrb[0].mxu0 %v1499
    %v1570 = vpop.f32.mrb[0].mxu0
    %v1571 = vadd.f32 0.0, %v1570
    %v1572 = vpop.f32.mrb[0].mxu0
    %v1573 = vadd.f32 0.0, %v1572
    %1574 = vdwg.mxu0
    %1575 = vmatprep.subr.mxu0 %v399
    %1576 = vmatpush1.msra.mxu0 %v398
    %1577 = vmatprep.subr.mxu0 %v403
    %1578 = vmatpush1.msra.mxu0 %v402
    %1579 = vmatprep.subr.mxu0 %v407
    %1580 = vmatpush1.msra.mxu0 %v406
    %1581 = vmatprep.subr.mxu0 %v411
    %1582 = vmatpush1.msra.mxu0 %v410
    %1583 = vmatprep.subr.mxu0 %v415
    %1584 = vmatpush1.msra.mxu0 %v414
    %1585 = vmatprep.subr.mxu0 %v419
    %1586 = vmatpush1.msra.mxu0 %v418
    %1587 = vmatprep.subr.mxu0 %v423
    %1588 = vmatpush1.msra.mxu0 %v422
    %1589 = vmatprep.subr.mxu0 %v427
    %1590 = vmatpush1.msra.mxu0 %v426
    %1591 = vmatprep.subr.mxu0 %v431
    %1592 = vmatpush1.msra.mxu0 %v430
    %1593 = vmatprep.subr.mxu0 %v435
    %1594 = vmatpush1.msra.mxu0 %v434
    %1595 = vmatprep.subr.mxu0 %v439
    %1596 = vmatpush1.msra.mxu0 %v438
    %1597 = vmatprep.subr.mxu0 %v443
    %1598 = vmatpush1.msra.mxu0 %v442
    %1599 = vmatprep.subr.mxu0 %v447
    %1600 = vmatpush1.msra.mxu0 %v446
    %1601 = vmatprep.subr.mxu0 %v451
    %1602 = vmatpush1.msra.mxu0 %v450
    %1603 = vmatprep.subr.mxu0 %v455
    %1604 = vmatpush1.msra.mxu0 %v454
    %1605 = vmatprep.subr.mxu0 %v459
    %1606 = vmatpush1.msra.mxu0 %v458
    %1607 = vmatprep.subr.mxu0 0.0
    %1608 = vmatpush1.msra.mxu0 0.0
    %1609 = vmatprep.subr.mxu0 0.0
    %1610 = vmatpush1.msra.mxu0 0.0
    %1611 = vmatprep.subr.mxu0 0.0
    %1612 = vmatpush1.msra.mxu0 0.0
    %1613 = vmatprep.subr.mxu0 0.0
    %1614 = vmatpush1.msra.mxu0 0.0
    %1615 = vmatprep.subr.mxu0 0.0
    %1616 = vmatpush1.msra.mxu0 0.0
    %1617 = vmatprep.subr.mxu0 0.0
    %1618 = vmatpush1.msra.mxu0 0.0
    %1619 = vmatprep.subr.mxu0 0.0
    %1620 = vmatpush1.msra.mxu0 0.0
    %1621 = vmatprep.subr.mxu0 0.0
    %1622 = vmatpush1.msra.mxu0 0.0
    %1623 = vmatprep.subr.mxu0 0.0
    %1624 = vmatpush1.msra.mxu0 0.0
    %1625 = vmatprep.subr.mxu0 0.0
    %1626 = vmatpush1.msra.mxu0 0.0
    %1627 = vmatprep.subr.mxu0 0.0
    %1628 = vmatpush1.msra.mxu0 0.0
    %1629 = vmatprep.subr.mxu0 0.0
    %1630 = vmatpush1.msra.mxu0 0.0
    %1631 = vmatprep.subr.mxu0 0.0
    %1632 = vmatpush1.msra.mxu0 0.0
    %1633 = vmatprep.subr.mxu0 0.0
    %1634 = vmatpush1.msra.mxu0 0.0
    %1635 = vmatprep.subr.mxu0 0.0
    %1636 = vmatpush1.msra.mxu0 0.0
    %1637 = vmatprep.subr.mxu0 0.0
    %1638 = vmatpush1.msra.mxu0 0.0
    %1639 = vmatprep.mubr.f32.mxu0 0.0
    %1640 = vmatmul.mubr.f32.gmra.mrb[0].mxu0 %v1499
    %v1641 = vpop.f32.mrb[0].mxu0
    %v1642 = vadd.f32 0.0, %v1641
    %v1643 = vpop.f32.mrb[0].mxu0
    %v1644 = vadd.f32 0.0, %v1643
    %1645 = vdwg.mxu0
    %v1646 = vadd.f32 %v1500, %v1571
    %v1647 = vadd.f32 %v1501, %v1573
    %v1648 = vadd.f32 %v1502, %v1642
    %v1649 = vadd.f32 %v1503, %v1644
    %v1650 = vxor.u32 %v1646, 2147483648
    %v1651 = vmul.f32 %v1650, 1.442695
    %v1652 = vpow.pop %v1651
    %v1653 = vadd.f32 %v1652, 1.0
    %v1654 = vrcp.pop %v1653
    %v1655 = vmul.f32 1.0, %v1654
    %v1656 = vxor.u32 %v1647, 2147483648
    %v1657 = vmul.f32 %v1656, 1.442695
    %v1658 = vpow.pop %v1657
    %v1659 = vadd.f32 %v1658, 1.0
    %v1660 = vrcp.pop %v1659
    %v1661 = vmul.f32 1.0, %v1660
    %v1662 = vtanh.pop %v1648
    %v1663 = vxor.u32 %v1649, 2147483648
    %v1664 = vmul.f32 %v1663, 1.442695
    %v1665 = vpow.pop %v1664
    %v1666 = vadd.f32 %v1665, 1.0
    %v1667 = vrcp.pop %v1666
    %v1668 = vmul.f32 1.0, %v1667
    %v1669 = vmul.f32 %v1661, %v1497
    %v1670 = vmul.f32 %v1655, %v1662
    %v1671 = vadd.f32 %v1669, %v1670
    %v1672 = vtanh.pop %v1671
    %v1673 = vmul.f32 %v1668, %v1672
    %v1674 = vld [vmem:[#allocation2 + $0xe0] sm:$0xff]
    %v1675 = vld [vmem:[#allocation2 + $0xe8] sm:$0xff]
    %v1676 = vld [vmem:[#allocation2 + $0xf0] sm:$0xff]
    %v1677 = vld [vmem:[#allocation2 + $0xf8] sm:$0xff]
    %1678 = vmatprep.subr.mxu0 %v397
    %1679 = vmatpush1.msra.mxu0 %v396
    %1680 = vmatprep.subr.mxu0 %v401
    %1681 = vmatpush1.msra.mxu0 %v400
    %1682 = vmatprep.subr.mxu0 %v405
    %1683 = vmatpush1.msra.mxu0 %v404
    %1684 = vmatprep.subr.mxu0 %v409
    %1685 = vmatpush1.msra.mxu0 %v408
    %1686 = vmatprep.subr.mxu0 %v413
    %1687 = vmatpush1.msra.mxu0 %v412
    %1688 = vmatprep.subr.mxu0 %v417
    %1689 = vmatpush1.msra.mxu0 %v416
    %1690 = vmatprep.subr.mxu0 %v421
    %1691 = vmatpush1.msra.mxu0 %v420
    %1692 = vmatprep.subr.mxu0 %v425
    %1693 = vmatpush1.msra.mxu0 %v424
    %1694 = vmatprep.subr.mxu0 %v429
    %1695 = vmatpush1.msra.mxu0 %v428
    %1696 = vmatprep.subr.mxu0 %v433
    %1697 = vmatpush1.msra.mxu0 %v432
    %1698 = vmatprep.subr.mxu0 %v437
    %1699 = vmatpush1.msra.mxu0 %v436
    %1700 = vmatprep.subr.mxu0 %v441
    %1701 = vmatpush1.msra.mxu0 %v440
    %1702 = vmatprep.subr.mxu0 %v445
    %1703 = vmatpush1.msra.mxu0 %v444
    %1704 = vmatprep.subr.mxu0 %v449
    %1705 = vmatpush1.msra.mxu0 %v448
    %1706 = vmatprep.subr.mxu0 %v453
    %1707 = vmatpush1.msra.mxu0 %v452
    %1708 = vmatprep.subr.mxu0 %v457
    %1709 = vmatpush1.msra.mxu0 %v456
    %1710 = vmatprep.subr.mxu0 0.0
    %1711 = vmatpush1.msra.mxu0 0.0
    %1712 = vmatprep.subr.mxu0 0.0
    %1713 = vmatpush1.msra.mxu0 0.0
    %1714 = vmatprep.subr.mxu0 0.0
    %1715 = vmatpush1.msra.mxu0 0.0
    %1716 = vmatprep.subr.mxu0 0.0
    %1717 = vmatpush1.msra.mxu0 0.0
    %1718 = vmatprep.subr.mxu0 0.0
    %1719 = vmatpush1.msra.mxu0 0.0
    %1720 = vmatprep.subr.mxu0 0.0
    %1721 = vmatpush1.msra.mxu0 0.0
    %1722 = vmatprep.subr.mxu0 0.0
    %1723 = vmatpush1.msra.mxu0 0.0
    %1724 = vmatprep.subr.mxu0 0.0
    %1725 = vmatpush1.msra.mxu0 0.0
    %1726 = vmatprep.subr.mxu0 0.0
    %1727 = vmatpush1.msra.mxu0 0.0
    %1728 = vmatprep.subr.mxu0 0.0
    %1729 = vmatpush1.msra.mxu0 0.0
    %1730 = vmatprep.subr.mxu0 0.0
    %1731 = vmatpush1.msra.mxu0 0.0
    %1732 = vmatprep.subr.mxu0 0.0
    %1733 = vmatpush1.msra.mxu0 0.0
    %1734 = vmatprep.subr.mxu0 0.0
    %1735 = vmatpush1.msra.mxu0 0.0
    %1736 = vmatprep.subr.mxu0 0.0
    %1737 = vmatpush1.msra.mxu0 0.0
    %1738 = vmatprep.subr.mxu0 0.0
    %1739 = vmatpush1.msra.mxu0 0.0
    %1740 = vmatprep.subr.mxu0 0.0
    %1741 = vmatpush1.msra.mxu0 0.0
    %1742 = vmatprep.mubr.f32.mxu0 0.0
    %1743 = vmatmul.mubr.f32.gmra.mrb[0].mxu0 %v1673
    %v1744 = vpop.f32.mrb[0].mxu0
    %v1745 = vadd.f32 0.0, %v1744
    %v1746 = vpop.f32.mrb[0].mxu0
    %v1747 = vadd.f32 0.0, %v1746
    %1748 = vdwg.mxu0
    %1749 = vmatprep.subr.mxu0 %v399
    %1750 = vmatpush1.msra.mxu0 %v398
    %1751 = vmatprep.subr.mxu0 %v403
    %1752 = vmatpush1.msra.mxu0 %v402
    %1753 = vmatprep.subr.mxu0 %v407
    %1754 = vmatpush1.msra.mxu0 %v406
    %1755 = vmatprep.subr.mxu0 %v411
    %1756 = vmatpush1.msra.mxu0 %v410
    %1757 = vmatprep.subr.mxu0 %v415
    %1758 = vmatpush1.msra.mxu0 %v414
    %1759 = vmatprep.subr.mxu0 %v419
    %1760 = vmatpush1.msra.mxu0 %v418
    %1761 = vmatprep.subr.mxu0 %v423
    %1762 = vmatpush1.msra.mxu0 %v422
    %1763 = vmatprep.subr.mxu0 %v427
    %1764 = vmatpush1.msra.mxu0 %v426
    %1765 = vmatprep.subr.mxu0 %v431
    %1766 = vmatpush1.msra.mxu0 %v430
    %1767 = vmatprep.subr.mxu0 %v435
    %1768 = vmatpush1.msra.mxu0 %v434
    %1769 = vmatprep.subr.mxu0 %v439
    %1770 = vmatpush1.msra.mxu0 %v438
    %1771 = vmatprep.subr.mxu0 %v443
    %1772 = vmatpush1.msra.mxu0 %v442
    %1773 = vmatprep.subr.mxu0 %v447
    %1774 = vmatpush1.msra.mxu0 %v446
    %1775 = vmatprep.subr.mxu0 %v451
    %1776 = vmatpush1.msra.mxu0 %v450
    %1777 = vmatprep.subr.mxu0 %v455
    %1778 = vmatpush1.msra.mxu0 %v454
    %1779 = vmatprep.subr.mxu0 %v459
    %1780 = vmatpush1.msra.mxu0 %v458
    %1781 = vmatprep.subr.mxu0 0.0
    %1782 = vmatpush1.msra.mxu0 0.0
    %1783 = vmatprep.subr.mxu0 0.0
    %1784 = vmatpush1.msra.mxu0 0.0
    %1785 = vmatprep.subr.mxu0 0.0
    %1786 = vmatpush1.msra.mxu0 0.0
    %1787 = vmatprep.subr.mxu0 0.0
    %1788 = vmatpush1.msra.mxu0 0.0
    %1789 = vmatprep.subr.mxu0 0.0
    %1790 = vmatpush1.msra.mxu0 0.0
    %1791 = vmatprep.subr.mxu0 0.0
    %1792 = vmatpush1.msra.mxu0 0.0
    %1793 = vmatprep.subr.mxu0 0.0
    %1794 = vmatpush1.msra.mxu0 0.0
    %1795 = vmatprep.subr.mxu0 0.0
    %1796 = vmatpush1.msra.mxu0 0.0
    %1797 = vmatprep.subr.mxu0 0.0
    %1798 = vmatpush1.msra.mxu0 0.0
    %1799 = vmatprep.subr.mxu0 0.0
    %1800 = vmatpush1.msra.mxu0 0.0
    %1801 = vmatprep.subr.mxu0 0.0
    %1802 = vmatpush1.msra.mxu0 0.0
    %1803 = vmatprep.subr.mxu0 0.0
    %1804 = vmatpush1.msra.mxu0 0.0
    %1805 = vmatprep.subr.mxu0 0.0
    %1806 = vmatpush1.msra.mxu0 0.0
    %1807 = vmatprep.subr.mxu0 0.0
    %1808 = vmatpush1.msra.mxu0 0.0
    %1809 = vmatprep.subr.mxu0 0.0
    %1810 = vmatpush1.msra.mxu0 0.0
    %1811 = vmatprep.subr.mxu0 0.0
    %1812 = vmatpush1.msra.mxu0 0.0
    %1813 = vmatprep.mubr.f32.mxu0 0.0
    %1814 = vmatmul.mubr.f32.gmra.mrb[0].mxu0 %v1673
    %v1815 = vpop.f32.mrb[0].mxu0
    %v1816 = vadd.f32 0.0, %v1815
    %v1817 = vpop.f32.mrb[0].mxu0
    %v1818 = vadd.f32 0.0, %v1817
    %1819 = vdwg.mxu0
    %v1820 = vadd.f32 %v1674, %v1745
    %v1821 = vadd.f32 %v1675, %v1747
    %v1822 = vadd.f32 %v1676, %v1816
    %v1823 = vadd.f32 %v1677, %v1818
    %v1824 = vxor.u32 %v1820, 2147483648
    %v1825 = vmul.f32 %v1824, 1.442695
    %v1826 = vpow.pop %v1825
    %v1827 = vadd.f32 %v1826, 1.0
    %v1828 = vrcp.pop %v1827
    %v1829 = vmul.f32 1.0, %v1828
    %v1830 = vxor.u32 %v1821, 2147483648
    %v1831 = vmul.f32 %v1830, 1.442695
    %v1832 = vpow.pop %v1831
    %v1833 = vadd.f32 %v1832, 1.0
    %v1834 = vrcp.pop %v1833
    %v1835 = vmul.f32 1.0, %v1834
    %v1836 = vtanh.pop %v1822
    %v1837 = vxor.u32 %v1823, 2147483648
    %v1838 = vmul.f32 %v1837, 1.442695
    %v1839 = vpow.pop %v1838
    %v1840 = vadd.f32 %v1839, 1.0
    %v1841 = vrcp.pop %v1840
    %v1842 = vmul.f32 1.0, %v1841
    %v1843 = vmul.f32 %v1835, %v1671
    %v1844 = vmul.f32 %v1829, %v1836
    %v1845 = vadd.f32 %v1843, %v1844
    %v1846 = vtanh.pop %v1845
    %v1847 = vmul.f32 %v1842, %v1846
    %v1848 = vld [vmem:[#allocation6] sm:$0xff]
    %v1849 = vld [vmem:[#allocation6 + $0x8] sm:$0xff]
    %v1850 = vld [vmem:[#allocation6 + $0x10] sm:$0xff]
    %v1851 = vld [vmem:[#allocation6 + $0x18] sm:$0xff]
    %v1852 = vld [vmem:[#allocation6 + $0x20] sm:$0xff]
    %v1853 = vld [vmem:[#allocation6 + $0x28] sm:$0xff]
    %v1854 = vld [vmem:[#allocation6 + $0x30] sm:$0xff]
    %v1855 = vld [vmem:[#allocation6 + $0x38] sm:$0xff]
    %v1856 = vld [vmem:[#allocation6 + $0x40] sm:$0xff]
    %v1857 = vld [vmem:[#allocation6 + $0x48] sm:$0xff]
    %v1858 = vld [vmem:[#allocation6 + $0x50] sm:$0xff]
    %v1859 = vld [vmem:[#allocation6 + $0x58] sm:$0xff]
    %v1860 = vld [vmem:[#allocation6 + $0x60] sm:$0xff]
    %v1861 = vld [vmem:[#allocation6 + $0x68] sm:$0xff]
    %v1862 = vld [vmem:[#allocation6 + $0x70] sm:$0xff]
    %v1863 = vld [vmem:[#allocation6 + $0x78] sm:$0xff]
    %v1864 = vld [vmem:[%s5] sm:$0x1]
    %v1866 = vlaneseq
    %v1867 = vshrl.u32 %v1866, 7
    %v1868 = vsub.s32 0, %v1867
    %v1869 = vrot.slane %v1864, %v1868
    %1871 = vmatprep.subr.mxu0 0.0
    %1872 = vmatpush1.msra.mxu0 %v1848
    %1873 = vmatprep.subr.mxu0 0.0
    %1874 = vmatpush1.msra.mxu0 %v1849
    %1875 = vmatprep.subr.mxu0 0.0
    %1876 = vmatpush1.msra.mxu0 %v1850
    %1877 = vmatprep.subr.mxu0 0.0
    %1878 = vmatpush1.msra.mxu0 %v1851
    %1879 = vmatprep.subr.mxu0 0.0
    %1880 = vmatpush1.msra.mxu0 %v1852
    %1881 = vmatprep.subr.mxu0 0.0
    %1882 = vmatpush1.msra.mxu0 %v1853
    %1883 = vmatprep.subr.mxu0 0.0
    %1884 = vmatpush1.msra.mxu0 %v1854
    %1885 = vmatprep.subr.mxu0 0.0
    %1886 = vmatpush1.msra.mxu0 %v1855
    %1887 = vmatprep.subr.mxu0 0.0
    %1888 = vmatpush1.msra.mxu0 %v1856
    %1889 = vmatprep.subr.mxu0 0.0
    %1890 = vmatpush1.msra.mxu0 %v1857
    %1891 = vmatprep.subr.mxu0 0.0
    %1892 = vmatpush1.msra.mxu0 %v1858
    %1893 = vmatprep.subr.mxu0 0.0
    %1894 = vmatpush1.msra.mxu0 %v1859
    %1895 = vmatprep.subr.mxu0 0.0
    %1896 = vmatpush1.msra.mxu0 %v1860
    %1897 = vmatprep.subr.mxu0 0.0
    %1898 = vmatpush1.msra.mxu0 %v1861
    %1899 = vmatprep.subr.mxu0 0.0
    %1900 = vmatpush1.msra.mxu0 %v1862
    %1901 = vmatprep.subr.mxu0 0.0
    %1902 = vmatpush1.msra.mxu0 %v1863
    %1903 = vmatprep.subr.mxu0 0.0
    %1904 = vmatpush1.msra.mxu0 0.0
    %1905 = vmatprep.subr.mxu0 0.0
    %1906 = vmatpush1.msra.mxu0 0.0
    %1907 = vmatprep.subr.mxu0 0.0
    %1908 = vmatpush1.msra.mxu0 0.0
    %1909 = vmatprep.subr.mxu0 0.0
    %1910 = vmatpush1.msra.mxu0 0.0
    %1911 = vmatprep.subr.mxu0 0.0
    %1912 = vmatpush1.msra.mxu0 0.0
    %1913 = vmatprep.subr.mxu0 0.0
    %1914 = vmatpush1.msra.mxu0 0.0
    %1915 = vmatprep.subr.mxu0 0.0
    %1916 = vmatpush1.msra.mxu0 0.0
    %1917 = vmatprep.subr.mxu0 0.0
    %1918 = vmatpush1.msra.mxu0 0.0
    %1919 = vmatprep.subr.mxu0 0.0
    %1920 = vmatpush1.msra.mxu0 0.0
    %1921 = vmatprep.subr.mxu0 0.0
    %1922 = vmatpush1.msra.mxu0 0.0
    %1923 = vmatprep.subr.mxu0 0.0
    %1924 = vmatpush1.msra.mxu0 0.0
    %1925 = vmatprep.subr.mxu0 0.0
    %1926 = vmatpush1.msra.mxu0 0.0
    %1927 = vmatprep.subr.mxu0 0.0
    %1928 = vmatpush1.msra.mxu0 0.0
    %1929 = vmatprep.subr.mxu0 0.0
    %1930 = vmatpush1.msra.mxu0 0.0
    %1931 = vmatprep.subr.mxu0 0.0
    %1932 = vmatpush1.msra.mxu0 0.0
    %1933 = vmatprep.subr.mxu0 0.0
    %1934 = vmatpush1.msra.mxu0 0.0
    %1935 = vmatprep.mubr.f32.mxu0 0.0
    %1936 = vmatmul.mubr.f32.gmra.mrb[0].mxu0 %v1847
    %v1937 = vpop.f32.mrb[0].mxu0
    %v1938 = vadd.f32 %v1869, %v1937
    %v1939 = vpop.f32.mrb[0].mxu0
    %1940 = vdwg.mxu0
    %1941 = vst [vmem:[#allocation8] sm:$0xff] %v1938
    // Predicated region
    $region34: #{tpu_custom_call.1} parent=1 // pred_check
      _
    $region35: #{tpu_custom_call.1} parent=1 // pred_check_branch
      %1943 = sbr.rel (0) target = $region37
    $region36: #{tpu_custom_call.1} parent=1 // pred_region
      %s1945 = ssub.s32 128, 128
      %1946 = vsyncadd [#allocation5], %s1945
      %s1948 = sshll.u32 [#allocation8], 4
      %s1949 = int_to_ptr.vmem [resolvable:$true] %s1948
      %1951 = dma.vmem_to_hbm [thread:$0]  %s1949, 128, %s6, [#allocation5]
    $region37: #{tpu_custom_call.1} parent=1 // pred_fallthru
      _
    // Predicated region
    $region38: #{tpu_custom_call.1} parent=1 // pred_check
      _
    $region39: #{tpu_custom_call.1} parent=1 // pred_check_branch
      %1953 = sbr.rel (0) target = $region41
    $region40: #{tpu_custom_call.1} parent=1 // pred_region
      %1954 = dma.done [#allocation5], 128
    $region41: #{tpu_custom_call.1} parent=1 // pred_fallthru
      _
    %1955 = vsyncpa [#allocation4], 1
    %1956 = vsyncpa [#allocation7], 1
    %1957 = vsyncpa [#allocation5], 1

</llo_original>
